<compile_context>
chip_gen: v7x
topology: tpu7x:2x2x1
jax: 0.10.0
libtpu: 0.0.40
codegen_flags: <defaults>
</compile_context>

<pallas_src>
import jax
import jax.numpy as jnp
from jax.experimental import pallas as pl
from jax.experimental.pallas import tpu as pltpu


# --------------------------------------------------------------------------- #
# Interpolation weights (PyTorch align_corners=False semantics)
# --------------------------------------------------------------------------- #
def _interp_matrix(out_size: int, in_size: int) -> jnp.ndarray:
    """Dense 1-D linear interpolation matrix matching PyTorch align_corners=False."""
    dst = jnp.arange(out_size, dtype=jnp.float32)
    scale = in_size / out_size
    src = (dst + 0.5) * scale - 0.5
    src = jnp.maximum(src, 0.0)                        # PyTorch clamps negative coords
    lo = jnp.clip(jnp.floor(src).astype(jnp.int32), 0, in_size - 1)
    hi = jnp.clip(lo + 1, 0, in_size - 1)
    frac = jnp.clip(src - lo.astype(jnp.float32), 0.0, 1.0)
    rows = jnp.arange(out_size)
    w = jnp.zeros((out_size, in_size), dtype=jnp.float32)
    w = w.at[rows, lo].add(1.0 - frac)
    w = w.at[rows, hi].add(frac)
    return w


# --------------------------------------------------------------------------- #
# Planning helpers
# --------------------------------------------------------------------------- #
def _round_up(x: int, m: int) -> int:
    return -(-x // m) * m


def _vmem_capacity_bytes() -> int:
    """Physical VMEM of the local chip; conservative (v7x-sized) fallback."""
    try:
        info = pltpu.get_tpu_info()
        v = getattr(info, "vmem_capacity_bytes", None)
        if v:
            return int(v)
    except Exception:
        pass
    return 64 << 20


def _plan(nc, din, dout, hwin, hwout_p, x_item, w_item, o_item, budget, max_b):
    """Pick (B volumes per grid step, HWout lane tile) under a VMEM budget.

    Prefers B*Din close to a full MXU M pass (256 rows) and large lane tiles
    (up to 2048) for HBM-roofline amortization; guarantees >= 2 grid steps
    whenever the problem permits (keeps both v7x TensorCores busy).
    """
    sub = 8 if x_item >= 4 else (16 if x_item == 2 else 32)

    n128 = hwout_p // 128
    tile_cands = sorted(
        {128 * d for d in range(1, n128 + 1) if n128 % d == 0 and 128 * d <= 2048},
        reverse=True)

    cap = nc if max_b is None else max(1, min(nc, max_b))
    b_cands = [b for b in range(cap, 0, -1)
               if nc % b == 0 and ((b * din) % sub == 0 or b == nc)]
    if not b_cands:
        b_cands = [nc]
    # Keep the per-volume unroll and the block row count bounded.
    pref = [b for b in b_cands if b * din <= 1024 and b <= 64]
    if pref:
        b_cands = pref

    def need(b, tile_n):
        x_blk = 2 * b * din * hwin * x_item                       # double-buffered input
        w_blk = 2 * hwin * tile_n * w_item                        # kron(Wh, Ww)^T tile
        wd_blk = 2 * _round_up(dout, sub) * _round_up(din, 128) * w_item
        o_blk = 2 * b * dout * tile_n * o_item                    # double-buffered output
        tmp = b * (din + dout) * tile_n * 4                       # f32 intermediates
        return x_blk + w_blk + wd_blk + o_blk + tmp + (2 << 20)   # + internal scratch

    best = None
    for b in b_cands:
        for tile_n in tile_cands:
            if need(b, tile_n) > budget:
                continue
            m = b * din
            score = (min(m, 256), min(tile_n, 2048), m, tile_n)
            if best is None or score > best[0]:
                best = (score, b, tile_n)
    if best is None:                      # nothing fits the soft budget: smallest block
        b, tile_n = b_cands[-1], 128
    else:
        _, b, tile_n = best

    # Ensure >= 2 grid steps when possible (negligible cost on single-TC chips).
    if (nc // b) * (hwout_p // tile_n) < 2:
        if hwout_p // tile_n == 1 and n128 >= 2:
            for t in tile_cands:
                if hwout_p // t >= 2:
                    tile_n = t
                    break
        elif nc // b == 1:
            smaller = [c for c in b_cands if c < b]
            if smaller:
                b = smaller[0]

    return b, tile_n, need(b, tile_n)


# --------------------------------------------------------------------------- #
# Kernel
# --------------------------------------------------------------------------- #
def _make_kernel(b: int, din: int):
    def kernel(x_ref, whw_ref, wd_ref, o_ref):
        # x_ref  : (B*Din, HWin)      B volumes, depth-major rows, lane = Hin*Win
        # whw_ref: (HWin, TILE_N)     kron(Wh, Ww)^T tile (lane-dense output cols)
        # wd_ref : (Dout, Din)        depth interpolation weights, shared by volumes
        # o_ref  : (B, Dout, TILE_N)
        t = jnp.dot(x_ref[...], whw_ref[...],
                    preferred_element_type=jnp.float32)        # (B*Din, TILE_N) f32
        wd = wd_ref[...]
        if wd.dtype != jnp.float32:
            t = t.astype(wd.dtype)                             # bf16 -> full-rate MXU
        for v in range(b):                                     # static unroll over volumes
            tv = t[v * din:(v + 1) * din, :]                   # (Din, TILE_N)
            ov = jnp.dot(wd, tv, preferred_element_type=jnp.float32)  # (Dout, TILE_N)
            o_ref[v] = ov.astype(o_ref.dtype)
    return kernel


_BUFFERED1_SUPPORTED = [None]  # None = unknown; probed on first call


def _build_call(nc, din, dout, hwin, hwout_p, b, tile_n, out_dtype,
                vmem_limit, cost, single_buffer_weights):
    n_tiles = hwout_p // tile_n
    w_kw = {}
    if single_buffer_weights:
        w_kw = dict(pipeline_mode=pl.Buffered(1))
    # Wd's block index is constant over the whole grid; W_hw^T's block index is
    # constant only when the lane axis is not tiled.
    wd_spec = pl.BlockSpec((dout, din), lambda j, i: (0, 0), **w_kw)
    whw_kw = w_kw if n_tiles == 1 else {}
    whw_spec = pl.BlockSpec((hwin, tile_n), lambda j, i: (0, j), **whw_kw)

    return pl.pallas_call(
        _make_kernel(b, din),
        out_shape=jax.ShapeDtypeStruct((nc, dout, hwout_p), out_dtype),
        grid=(n_tiles, nc // b),
        in_specs=[
            pl.BlockSpec((b * din, hwin), lambda j, i: (i, 0)),
            whw_spec,
            wd_spec,
        ],
        out_specs=pl.BlockSpec((b, dout, tile_n), lambda j, i: (i, 0, j)),
        compiler_params=pltpu.CompilerParams(
            dimension_semantics=("parallel", "parallel"),
            vmem_limit_bytes=vmem_limit,
        ),
        cost_estimate=cost,
    )


# --------------------------------------------------------------------------- #
# Public wrapper
# --------------------------------------------------------------------------- #
def interpolate_trilinear(x, size, max_volumes_per_step=None):
    """Trilinear resize of x: (N, C, Din, Hin, Win) -> (N, C, *size).

    Matches F.interpolate(x, size=size, mode='trilinear') (align_corners=False).
    """
    if isinstance(size, int):
        size = (size, size, size)
    n, c, din, hin, win = x.shape
    dout, hout, wout = size
    nc = n * c
    hwin, hwout = hin * win, hout * wout
    hwout_p = _round_up(hwout, 128)          # lane-dense stores (no masked vst)

    orig_dtype = x.dtype
    if x.dtype == jnp.bfloat16:
        w_dtype = jnp.bfloat16
    else:
        if x.dtype != jnp.float32:
            x = x.astype(jnp.float32)
        w_dtype = jnp.float32

    # 1-D interpolation weights (PyTorch align_corners=False semantics).
    wd = _interp_matrix(dout, din)
    wh = _interp_matrix(hout, hin)
    ww = _interp_matrix(wout, win)

    # Fuse H and W; pre-transposed so the kernel contracts x's lane axis and the
    # result is lane-dense.  Pad output columns to a multiple of 128 with zeros.
    w_hw_t = jnp.kron(wh, ww).T                                   # (HWin, HWout)
    if hwout_p != hwout:
        w_hw_t = jnp.pad(w_hw_t, ((0, 0), (0, hwout_p - hwout)))
    w_hw_t = w_hw_t.astype(w_dtype)
    wd = wd.astype(w_dtype)

    x_item = jnp.dtype(x.dtype).itemsize
    w_item = jnp.dtype(w_dtype).itemsize

    phys_vmem = _vmem_capacity_bytes()
    budget = int(phys_vmem * 0.45)
    b, tile_n, vmem_need = _plan(nc, din, dout, hwin, hwout_p,
                                 x_item, w_item, x_item, budget,
                                 max_volumes_per_step)
    n_tiles = hwout_p // tile_n

    # Generation-aware clamp: <= ~48 MiB on v7x (64 MiB phys), <= ~96 MiB on v5e/v6e.
    vmem_limit = min(max(int(vmem_need) + (4 << 20), 32 << 20), int(phys_vmem * 0.75))

    # Cost estimate reflecting the work actually executed (kron HW matmul +
    # per-volume depth matmuls; x is re-read once per lane tile).
    flops = 2 * nc * din * hwin * hwout_p + 2 * nc * dout * din * hwout_p
    bytes_accessed = (nc * din * hwin * x_item) * n_tiles \
        + hwin * hwout_p * w_item + dout * din * w_item \
        + nc * dout * hwout_p * x_item
    cost = pl.CostEstimate(flops=int(flops), transcendentals=0,
                           bytes_accessed=int(bytes_accessed))

    xf = x.reshape(nc * din, hwin)            # lane-dense 2-D input (wrapper-side)

    sb_options = [True, False] if _BUFFERED1_SUPPORTED[0] is not False else [False]
    out3 = None
    for sb in sb_options:
        try:
            out3 = _build_call(nc, din, dout, hwin, hwout_p, b, tile_n, x.dtype,
                               vmem_limit, cost, sb)(xf, w_hw_t, wd)
        except Exception:
            if not sb:
                raise
            _BUFFERED1_SUPPORTED[0] = False   # retry with default double-buffering
            continue
        if sb:
            _BUFFERED1_SUPPORTED[0] = True
        break

    out = out3[:, :, :hwout].reshape(n, c, dout, hout, wout)
    return out.astype(orig_dtype)


# --------------------------------------------------------------------------- #
# Pure-JAX reference (same separable interpolation matrices)
# --------------------------------------------------------------------------- #
def _reference(x, size):
    dout, hout, wout = size
    _, _, din, hin, win = x.shape
    wd = _interp_matrix(dout, din)
    wh = _interp_matrix(hout, hin)
    ww = _interp_matrix(wout, win)
    return jnp.einsum("od,ph,qw,ncdhw->ncopq", wd, wh, ww,
                      x.astype(jnp.float32))


if __name__ == "__main__":
    key = jax.random.PRNGKey(0)
    # Small NCDHW volume, upsampled to a non-uniform target size.
    x = jax.random.normal(key, (2, 4, 8, 8, 8), dtype=jnp.float32)
    size = (12, 16, 16)
    ref = _reference(x, size)

    out = jax.block_until_ready(interpolate_trilinear(x, size))
    assert out.shape == (2, 4, 12, 16, 16), out.shape
    assert jnp.allclose(out, ref, atol=1e-4, rtol=1e-4), "mismatch vs reference"

    # Multi-step grid over the volume axis.
    out2 = jax.block_until_ready(
        interpolate_trilinear(x, size, max_volumes_per_step=2))
    assert jnp.allclose(out2, ref, atol=1e-4, rtol=1e-4), "mismatch (tiled volumes)"

    # Odd, non-128-aligned spatial sizes: exercises the lane-padding path.
    x3 = jax.random.normal(jax.random.PRNGKey(1), (1, 3, 8, 6, 5), dtype=jnp.float32)
    size3 = (10, 7, 9)
    ref3 = _reference(x3, size3)
    out3 = jax.block_until_ready(interpolate_trilinear(x3, size3))
    assert out3.shape == (1, 3, 10, 7, 9), out3.shape
    assert jnp.allclose(out3, ref3, atol=1e-4, rtol=1e-4), "mismatch (padded lanes)"

    # bf16 input: bf16 MXU operands with f32 accumulation.
    xb = x.astype(jnp.bfloat16)
    outb = jax.block_until_ready(interpolate_trilinear(xb, size))
    assert outb.dtype == jnp.bfloat16 and outb.shape == (2, 4, 12, 16, 16)
    assert jnp.allclose(outb.astype(jnp.float32), ref, atol=1e-1, rtol=1e-1), \
        "mismatch (bf16)"

    print("KERNEL_OK")
</pallas_src>

<mosaic_0001>
module attributes {stable_mosaic.version = 11 : i64} {
  func.func @kernel(%arg0: i32, %arg1: i32, %arg2: memref<64x64xf32, #tpu.memory_space<vmem>>, %arg3: memref<64x128xf32, #tpu.memory_space<vmem>>, %arg4: memref<12x8xf32, #tpu.memory_space<vmem>>, %arg5: memref<8x12x128xf32, #tpu.memory_space<vmem>>) attributes {dimension_semantics = [#tpu.dimension_semantics<parallel>, #tpu.dimension_semantics<parallel>], iteration_bounds = array<i64: 2, 1>, scalar_prefetch = 0 : i64, scratch_operands = 0 : i64, tpu.core_type = #tpu.core_type<tc>, window_params = [{transform_indices = @transform_0, window_bounds = array<i64: 64, 64>}, {transform_indices = @transform_1, window_bounds = array<i64: 64, 128>}, {pipeline_mode = #tpu.pipeline_mode<synchronous>, transform_indices = @transform_2, window_bounds = array<i64: 12, 8>}, {transform_indices = @transform_3, window_bounds = array<i64: 8, 12, 128>}]} {
    %c0 = arith.constant 0 : index
    %c0_0 = arith.constant 0 : index
    %0 = vector.load %arg2[%c0, %c0_0] : memref<64x64xf32, #tpu.memory_space<vmem>>, vector<64x64xf32>
    %c0_1 = arith.constant 0 : index
    %c0_2 = arith.constant 0 : index
    %1 = vector.load %arg3[%c0_1, %c0_2] : memref<64x128xf32, #tpu.memory_space<vmem>>, vector<64x128xf32>
    %cst = arith.constant dense<0.000000e+00> : vector<64x128xf32>
    %2 = tpu.matmul %0, %1, %cst {dimension_numbers = #tpu.dot_dimension_numbers<[1], [0], [0], [1], [0, 0, 1, 1], [], []>} : vector<64x64xf32>, vector<64x128xf32>, vector<64x128xf32> -> vector<64x128xf32>
    %c0_3 = arith.constant 0 : index
    %c0_4 = arith.constant 0 : index
    %3 = vector.load %arg4[%c0_3, %c0_4] : memref<12x8xf32, #tpu.memory_space<vmem>>, vector<12x8xf32>
    %4 = vector.extract_strided_slice %2 {offsets = [0, 0], sizes = [8, 128], strides = [1, 1]} : vector<64x128xf32> to vector<8x128xf32>
    %cst_5 = arith.constant dense<0.000000e+00> : vector<12x128xf32>
    %5 = tpu.matmul %3, %4, %cst_5 {dimension_numbers = #tpu.dot_dimension_numbers<[1], [0], [0], [1], [0, 0, 1, 1], [], []>} : vector<12x8xf32>, vector<8x128xf32>, vector<12x128xf32> -> vector<12x128xf32>
    %c0_6 = arith.constant 0 : index
    %c0_7 = arith.constant 0 : index
    %c0_8 = arith.constant 0 : index
    %6 = vector.load %arg5[%c0_6, %c0_7, %c0_8] : memref<8x12x128xf32, #tpu.memory_space<vmem>>, vector<1x12x128xf32>
    %7 = vector.shape_cast %6 : vector<1x12x128xf32> to vector<12x128xf32>
    %8 = vector.shape_cast %5 : vector<12x128xf32> to vector<1x12x128xf32>
    tpu.vector_store %arg5[%c0_6, %c0_7, %c0_8], %8 {strides = array<i32>} : memref<8x12x128xf32, #tpu.memory_space<vmem>>, vector<1x12x128xf32>,
    %9 = vector.extract_strided_slice %2 {offsets = [8, 0], sizes = [8, 128], strides = [1, 1]} : vector<64x128xf32> to vector<8x128xf32>
    %cst_9 = arith.constant dense<0.000000e+00> : vector<12x128xf32>
    %10 = tpu.matmul %3, %9, %cst_9 {dimension_numbers = #tpu.dot_dimension_numbers<[1], [0], [0], [1], [0, 0, 1, 1], [], []>} : vector<12x8xf32>, vector<8x128xf32>, vector<12x128xf32> -> vector<12x128xf32>
    %c1 = arith.constant 1 : index
    %c0_10 = arith.constant 0 : index
    %c0_11 = arith.constant 0 : index
    %11 = vector.load %arg5[%c1, %c0_10, %c0_11] : memref<8x12x128xf32, #tpu.memory_space<vmem>>, vector<1x12x128xf32>
    %12 = vector.shape_cast %11 : vector<1x12x128xf32> to vector<12x128xf32>
    %13 = vector.shape_cast %10 : vector<12x128xf32> to vector<1x12x128xf32>
    tpu.vector_store %arg5[%c1, %c0_10, %c0_11], %13 {strides = array<i32>} : memref<8x12x128xf32, #tpu.memory_space<vmem>>, vector<1x12x128xf32>,
    %14 = vector.extract_strided_slice %2 {offsets = [16, 0], sizes = [8, 128], strides = [1, 1]} : vector<64x128xf32> to vector<8x128xf32>
    %cst_12 = arith.constant dense<0.000000e+00> : vector<12x128xf32>
    %15 = tpu.matmul %3, %14, %cst_12 {dimension_numbers = #tpu.dot_dimension_numbers<[1], [0], [0], [1], [0, 0, 1, 1], [], []>} : vector<12x8xf32>, vector<8x128xf32>, vector<12x128xf32> -> vector<12x128xf32>
    %c2 = arith.constant 2 : index
    %c0_13 = arith.constant 0 : index
    %c0_14 = arith.constant 0 : index
    %16 = vector.load %arg5[%c2, %c0_13, %c0_14] : memref<8x12x128xf32, #tpu.memory_space<vmem>>, vector<1x12x128xf32>
    %17 = vector.shape_cast %16 : vector<1x12x128xf32> to vector<12x128xf32>
    %18 = vector.shape_cast %15 : vector<12x128xf32> to vector<1x12x128xf32>
    tpu.vector_store %arg5[%c2, %c0_13, %c0_14], %18 {strides = array<i32>} : memref<8x12x128xf32, #tpu.memory_space<vmem>>, vector<1x12x128xf32>,
    %19 = vector.extract_strided_slice %2 {offsets = [24, 0], sizes = [8, 128], strides = [1, 1]} : vector<64x128xf32> to vector<8x128xf32>
    %cst_15 = arith.constant dense<0.000000e+00> : vector<12x128xf32>
    %20 = tpu.matmul %3, %19, %cst_15 {dimension_numbers = #tpu.dot_dimension_numbers<[1], [0], [0], [1], [0, 0, 1, 1], [], []>} : vector<12x8xf32>, vector<8x128xf32>, vector<12x128xf32> -> vector<12x128xf32>
    %c3 = arith.constant 3 : index
    %c0_16 = arith.constant 0 : index
    %c0_17 = arith.constant 0 : index
    %21 = vector.load %arg5[%c3, %c0_16, %c0_17] : memref<8x12x128xf32, #tpu.memory_space<vmem>>, vector<1x12x128xf32>
    %22 = vector.shape_cast %21 : vector<1x12x128xf32> to vector<12x128xf32>
    %23 = vector.shape_cast %20 : vector<12x128xf32> to vector<1x12x128xf32>
    tpu.vector_store %arg5[%c3, %c0_16, %c0_17], %23 {strides = array<i32>} : memref<8x12x128xf32, #tpu.memory_space<vmem>>, vector<1x12x128xf32>,
    %24 = vector.extract_strided_slice %2 {offsets = [32, 0], sizes = [8, 128], strides = [1, 1]} : vector<64x128xf32> to vector<8x128xf32>
    %cst_18 = arith.constant dense<0.000000e+00> : vector<12x128xf32>
    %25 = tpu.matmul %3, %24, %cst_18 {dimension_numbers = #tpu.dot_dimension_numbers<[1], [0], [0], [1], [0, 0, 1, 1], [], []>} : vector<12x8xf32>, vector<8x128xf32>, vector<12x128xf32> -> vector<12x128xf32>
    %c4 = arith.constant 4 : index
    %c0_19 = arith.constant 0 : index
    %c0_20 = arith.constant 0 : index
    %26 = vector.load %arg5[%c4, %c0_19, %c0_20] : memref<8x12x128xf32, #tpu.memory_space<vmem>>, vector<1x12x128xf32>
    %27 = vector.shape_cast %26 : vector<1x12x128xf32> to vector<12x128xf32>
    %28 = vector.shape_cast %25 : vector<12x128xf32> to vector<1x12x128xf32>
    tpu.vector_store %arg5[%c4, %c0_19, %c0_20], %28 {strides = array<i32>} : memref<8x12x128xf32, #tpu.memory_space<vmem>>, vector<1x12x128xf32>,
    %29 = vector.extract_strided_slice %2 {offsets = [40, 0], sizes = [8, 128], strides = [1, 1]} : vector<64x128xf32> to vector<8x128xf32>
    %cst_21 = arith.constant dense<0.000000e+00> : vector<12x128xf32>
    %30 = tpu.matmul %3, %29, %cst_21 {dimension_numbers = #tpu.dot_dimension_numbers<[1], [0], [0], [1], [0, 0, 1, 1], [], []>} : vector<12x8xf32>, vector<8x128xf32>, vector<12x128xf32> -> vector<12x128xf32>
    %c5 = arith.constant 5 : index
    %c0_22 = arith.constant 0 : index
    %c0_23 = arith.constant 0 : index
    %31 = vector.load %arg5[%c5, %c0_22, %c0_23] : memref<8x12x128xf32, #tpu.memory_space<vmem>>, vector<1x12x128xf32>
    %32 = vector.shape_cast %31 : vector<1x12x128xf32> to vector<12x128xf32>
    %33 = vector.shape_cast %30 : vector<12x128xf32> to vector<1x12x128xf32>
    tpu.vector_store %arg5[%c5, %c0_22, %c0_23], %33 {strides = array<i32>} : memref<8x12x128xf32, #tpu.memory_space<vmem>>, vector<1x12x128xf32>,
    %34 = vector.extract_strided_slice %2 {offsets = [48, 0], sizes = [8, 128], strides = [1, 1]} : vector<64x128xf32> to vector<8x128xf32>
    %cst_24 = arith.constant dense<0.000000e+00> : vector<12x128xf32>
    %35 = tpu.matmul %3, %34, %cst_24 {dimension_numbers = #tpu.dot_dimension_numbers<[1], [0], [0], [1], [0, 0, 1, 1], [], []>} : vector<12x8xf32>, vector<8x128xf32>, vector<12x128xf32> -> vector<12x128xf32>
    %c6 = arith.constant 6 : index
    %c0_25 = arith.constant 0 : index
    %c0_26 = arith.constant 0 : index
    %36 = vector.load %arg5[%c6, %c0_25, %c0_26] : memref<8x12x128xf32, #tpu.memory_space<vmem>>, vector<1x12x128xf32>
    %37 = vector.shape_cast %36 : vector<1x12x128xf32> to vector<12x128xf32>
    %38 = vector.shape_cast %35 : vector<12x128xf32> to vector<1x12x128xf32>
    tpu.vector_store %arg5[%c6, %c0_25, %c0_26], %38 {strides = array<i32>} : memref<8x12x128xf32, #tpu.memory_space<vmem>>, vector<1x12x128xf32>,
    %39 = vector.extract_strided_slice %2 {offsets = [56, 0], sizes = [8, 128], strides = [1, 1]} : vector<64x128xf32> to vector<8x128xf32>
    %cst_27 = arith.constant dense<0.000000e+00> : vector<12x128xf32>
    %40 = tpu.matmul %3, %39, %cst_27 {dimension_numbers = #tpu.dot_dimension_numbers<[1], [0], [0], [1], [0, 0, 1, 1], [], []>} : vector<12x8xf32>, vector<8x128xf32>, vector<12x128xf32> -> vector<12x128xf32>
    %c7 = arith.constant 7 : index
    %c0_28 = arith.constant 0 : index
    %c0_29 = arith.constant 0 : index
    %41 = vector.load %arg5[%c7, %c0_28, %c0_29] : memref<8x12x128xf32, #tpu.memory_space<vmem>>, vector<1x12x128xf32>
    %42 = vector.shape_cast %41 : vector<1x12x128xf32> to vector<12x128xf32>
    %43 = vector.shape_cast %40 : vector<12x128xf32> to vector<1x12x128xf32>
    tpu.vector_store %arg5[%c7, %c0_28, %c0_29], %43 {strides = array<i32>} : memref<8x12x128xf32, #tpu.memory_space<vmem>>, vector<1x12x128xf32>,
    return
  }
  func.func @transform_0(%arg0: i32, %arg1: i32) -> (i32, i32) {
    %c0_i32 = arith.constant 0 : i32
    %c0_i32_0 = arith.constant 0 : i32
    return %arg1, %c0_i32 : i32, i32
  }
  func.func @transform_1(%arg0: i32, %arg1: i32) -> (i32, i32) {
    %c0_i32 = arith.constant 0 : i32
    %c0_i32_0 = arith.constant 0 : i32
    return %c0_i32, %arg0 : i32, i32
  }
  func.func @transform_2(%arg0: i32, %arg1: i32) -> (i32, i32) {
    %c0_i32 = arith.constant 0 : i32
    %c0_i32_0 = arith.constant 0 : i32
    %c0_i32_1 = arith.constant 0 : i32
    return %c0_i32, %c0_i32_0 : i32, i32
  }
  func.func @transform_3(%arg0: i32, %arg1: i32) -> (i32, i32, i32) {
    %c0_i32 = arith.constant 0 : i32
    %c0_i32_0 = arith.constant 0 : i32
    return %arg1, %c0_i32, %arg0 : i32, i32, i32
  }
}

module attributes {stable_mosaic.version = 11 : i64} {
  func.func @kernel(%arg0: i32, %arg1: i32, %arg2: memref<64x64xf32, #tpu.memory_space<vmem>>, %arg3: memref<64x128xf32, #tpu.memory_space<vmem>>, %arg4: memref<12x8xf32, #tpu.memory_space<vmem>>, %arg5: memref<8x12x128xf32, #tpu.memory_space<vmem>>) attributes {dimension_semantics = [#tpu.dimension_semantics<parallel>, #tpu.dimension_semantics<parallel>], iteration_bounds = array<i64: 2, 1>, scalar_prefetch = 0 : i64, scratch_operands = 0 : i64, tpu.core_type = #tpu.core_type<tc>, window_params = [{transform_indices = @transform_0, window_bounds = array<i64: 64, 64>}, {transform_indices = @transform_1, window_bounds = array<i64: 64, 128>}, {pipeline_mode = #tpu.pipeline_mode<synchronous>, transform_indices = @transform_2, window_bounds = array<i64: 12, 8>}, {transform_indices = @transform_3, window_bounds = array<i64: 8, 12, 128>}]} {
    %c0 = arith.constant 0 : index
    %c0_0 = arith.constant 0 : index
    %0 = vector.load %arg2[%c0, %c0_0] : memref<64x64xf32, #tpu.memory_space<vmem>>, vector<64x64xf32>
    %c0_1 = arith.constant 0 : index
    %c0_2 = arith.constant 0 : index
    %1 = vector.load %arg3[%c0_1, %c0_2] : memref<64x128xf32, #tpu.memory_space<vmem>>, vector<64x128xf32>
    %cst = arith.constant dense<0.000000e+00> : vector<64x128xf32>
    %2 = tpu.matmul %0, %1, %cst {dimension_numbers = #tpu.dot_dimension_numbers<[1], [0], [0], [1], [0, 0, 1, 1], [], []>} : vector<64x64xf32>, vector<64x128xf32>, vector<64x128xf32> -> vector<64x128xf32>
    %c0_3 = arith.constant 0 : index
    %c0_4 = arith.constant 0 : index
    %3 = vector.load %arg4[%c0_3, %c0_4] : memref<12x8xf32, #tpu.memory_space<vmem>>, vector<12x8xf32>
    %4 = vector.extract_strided_slice %2 {offsets = [0, 0], sizes = [8, 128], strides = [1, 1]} : vector<64x128xf32> to vector<8x128xf32>
    %cst_5 = arith.constant dense<0.000000e+00> : vector<12x128xf32>
    %5 = tpu.matmul %3, %4, %cst_5 {dimension_numbers = #tpu.dot_dimension_numbers<[1], [0], [0], [1], [0, 0, 1, 1], [], []>} : vector<12x8xf32>, vector<8x128xf32>, vector<12x128xf32> -> vector<12x128xf32>
    %c0_6 = arith.constant 0 : index
    %c0_7 = arith.constant 0 : index
    %c0_8 = arith.constant 0 : index
    %6 = vector.load %arg5[%c0_6, %c0_7, %c0_8] : memref<8x12x128xf32, #tpu.memory_space<vmem>>, vector<1x12x128xf32>
    %7 = vector.shape_cast %6 : vector<1x12x128xf32> to vector<12x128xf32>
    %8 = vector.shape_cast %5 : vector<12x128xf32> to vector<1x12x128xf32>
    tpu.vector_store %arg5[%c0_6, %c0_7, %c0_8], %8 {strides = array<i32>} : memref<8x12x128xf32, #tpu.memory_space<vmem>>, vector<1x12x128xf32>,
    %9 = vector.extract_strided_slice %2 {offsets = [8, 0], sizes = [8, 128], strides = [1, 1]} : vector<64x128xf32> to vector<8x128xf32>
    %cst_9 = arith.constant dense<0.000000e+00> : vector<12x128xf32>
    %10 = tpu.matmul %3, %9, %cst_9 {dimension_numbers = #tpu.dot_dimension_numbers<[1], [0], [0], [1], [0, 0, 1, 1], [], []>} : vector<12x8xf32>, vector<8x128xf32>, vector<12x128xf32> -> vector<12x128xf32>
    %c1 = arith.constant 1 : index
    %c0_10 = arith.constant 0 : index
    %c0_11 = arith.constant 0 : index
    %11 = vector.load %arg5[%c1, %c0_10, %c0_11] : memref<8x12x128xf32, #tpu.memory_space<vmem>>, vector<1x12x128xf32>
    %12 = vector.shape_cast %11 : vector<1x12x128xf32> to vector<12x128xf32>
    %13 = vector.shape_cast %10 : vector<12x128xf32> to vector<1x12x128xf32>
    tpu.vector_store %arg5[%c1, %c0_10, %c0_11], %13 {strides = array<i32>} : memref<8x12x128xf32, #tpu.memory_space<vmem>>, vector<1x12x128xf32>,
    %14 = vector.extract_strided_slice %2 {offsets = [16, 0], sizes = [8, 128], strides = [1, 1]} : vector<64x128xf32> to vector<8x128xf32>
    %cst_12 = arith.constant dense<0.000000e+00> : vector<12x128xf32>
    %15 = tpu.matmul %3, %14, %cst_12 {dimension_numbers = #tpu.dot_dimension_numbers<[1], [0], [0], [1], [0, 0, 1, 1], [], []>} : vector<12x8xf32>, vector<8x128xf32>, vector<12x128xf32> -> vector<12x128xf32>
    %c2 = arith.constant 2 : index
    %c0_13 = arith.constant 0 : index
    %c0_14 = arith.constant 0 : index
    %16 = vector.load %arg5[%c2, %c0_13, %c0_14] : memref<8x12x128xf32, #tpu.memory_space<vmem>>, vector<1x12x128xf32>
    %17 = vector.shape_cast %16 : vector<1x12x128xf32> to vector<12x128xf32>
    %18 = vector.shape_cast %15 : vector<12x128xf32> to vector<1x12x128xf32>
    tpu.vector_store %arg5[%c2, %c0_13, %c0_14], %18 {strides = array<i32>} : memref<8x12x128xf32, #tpu.memory_space<vmem>>, vector<1x12x128xf32>,
    %19 = vector.extract_strided_slice %2 {offsets = [24, 0], sizes = [8, 128], strides = [1, 1]} : vector<64x128xf32> to vector<8x128xf32>
    %cst_15 = arith.constant dense<0.000000e+00> : vector<12x128xf32>
    %20 = tpu.matmul %3, %19, %cst_15 {dimension_numbers = #tpu.dot_dimension_numbers<[1], [0], [0], [1], [0, 0, 1, 1], [], []>} : vector<12x8xf32>, vector<8x128xf32>, vector<12x128xf32> -> vector<12x128xf32>
    %c3 = arith.constant 3 : index
    %c0_16 = arith.constant 0 : index
    %c0_17 = arith.constant 0 : index
    %21 = vector.load %arg5[%c3, %c0_16, %c0_17] : memref<8x12x128xf32, #tpu.memory_space<vmem>>, vector<1x12x128xf32>
    %22 = vector.shape_cast %21 : vector<1x12x128xf32> to vector<12x128xf32>
    %23 = vector.shape_cast %20 : vector<12x128xf32> to vector<1x12x128xf32>
    tpu.vector_store %arg5[%c3, %c0_16, %c0_17], %23 {strides = array<i32>} : memref<8x12x128xf32, #tpu.memory_space<vmem>>, vector<1x12x128xf32>,
    %24 = vector.extract_strided_slice %2 {offsets = [32, 0], sizes = [8, 128], strides = [1, 1]} : vector<64x128xf32> to vector<8x128xf32>
    %cst_18 = arith.constant dense<0.000000e+00> : vector<12x128xf32>
    %25 = tpu.matmul %3, %24, %cst_18 {dimension_numbers = #tpu.dot_dimension_numbers<[1], [0], [0], [1], [0, 0, 1, 1], [], []>} : vector<12x8xf32>, vector<8x128xf32>, vector<12x128xf32> -> vector<12x128xf32>
    %c4 = arith.constant 4 : index
    %c0_19 = arith.constant 0 : index
    %c0_20 = arith.constant 0 : index
    %26 = vector.load %arg5[%c4, %c0_19, %c0_20] : memref<8x12x128xf32, #tpu.memory_space<vmem>>, vector<1x12x128xf32>
    %27 = vector.shape_cast %26 : vector<1x12x128xf32> to vector<12x128xf32>
    %28 = vector.shape_cast %25 : vector<12x128xf32> to vector<1x12x128xf32>
    tpu.vector_store %arg5[%c4, %c0_19, %c0_20], %28 {strides = array<i32>} : memref<8x12x128xf32, #tpu.memory_space<vmem>>, vector<1x12x128xf32>,
    %29 = vector.extract_strided_slice %2 {offsets = [40, 0], sizes = [8, 128], strides = [1, 1]} : vector<64x128xf32> to vector<8x128xf32>
    %cst_21 = arith.constant dense<0.000000e+00> : vector<12x128xf32>
    %30 = tpu.matmul %3, %29, %cst_21 {dimension_numbers = #tpu.dot_dimension_numbers<[1], [0], [0], [1], [0, 0, 1, 1], [], []>} : vector<12x8xf32>, vector<8x128xf32>, vector<12x128xf32> -> vector<12x128xf32>
    %c5 = arith.constant 5 : index
    %c0_22 = arith.constant 0 : index
    %c0_23 = arith.constant 0 : index
    %31 = vector.load %arg5[%c5, %c0_22, %c0_23] : memref<8x12x128xf32, #tpu.memory_space<vmem>>, vector<1x12x128xf32>
    %32 = vector.shape_cast %31 : vector<1x12x128xf32> to vector<12x128xf32>
    %33 = vector.shape_cast %30 : vector<12x128xf32> to vector<1x12x128xf32>
    tpu.vector_store %arg5[%c5, %c0_22, %c0_23], %33 {strides = array<i32>} : memref<8x12x128xf32, #tpu.memory_space<vmem>>, vector<1x12x128xf32>,
    %34 = vector.extract_strided_slice %2 {offsets = [48, 0], sizes = [8, 128], strides = [1, 1]} : vector<64x128xf32> to vector<8x128xf32>
    %cst_24 = arith.constant dense<0.000000e+00> : vector<12x128xf32>
    %35 = tpu.matmul %3, %34, %cst_24 {dimension_numbers = #tpu.dot_dimension_numbers<[1], [0], [0], [1], [0, 0, 1, 1], [], []>} : vector<12x8xf32>, vector<8x128xf32>, vector<12x128xf32> -> vector<12x128xf32>
    %c6 = arith.constant 6 : index
    %c0_25 = arith.constant 0 : index
    %c0_26 = arith.constant 0 : index
    %36 = vector.load %arg5[%c6, %c0_25, %c0_26] : memref<8x12x128xf32, #tpu.memory_space<vmem>>, vector<1x12x128xf32>
    %37 = vector.shape_cast %36 : vector<1x12x128xf32> to vector<12x128xf32>
    %38 = vector.shape_cast %35 : vector<12x128xf32> to vector<1x12x128xf32>
    tpu.vector_store %arg5[%c6, %c0_25, %c0_26], %38 {strides = array<i32>} : memref<8x12x128xf32, #tpu.memory_space<vmem>>, vector<1x12x128xf32>,
    %39 = vector.extract_strided_slice %2 {offsets = [56, 0], sizes = [8, 128], strides = [1, 1]} : vector<64x128xf32> to vector<8x128xf32>
    %cst_27 = arith.constant dense<0.000000e+00> : vector<12x128xf32>
    %40 = tpu.matmul %3, %39, %cst_27 {dimension_numbers = #tpu.dot_dimension_numbers<[1], [0], [0], [1], [0, 0, 1, 1], [], []>} : vector<12x8xf32>, vector<8x128xf32>, vector<12x128xf32> -> vector<12x128xf32>
    %c7 = arith.constant 7 : index
    %c0_28 = arith.constant 0 : index
    %c0_29 = arith.constant 0 : index
    %41 = vector.load %arg5[%c7, %c0_28, %c0_29] : memref<8x12x128xf32, #tpu.memory_space<vmem>>, vector<1x12x128xf32>
    %42 = vector.shape_cast %41 : vector<1x12x128xf32> to vector<12x128xf32>
    %43 = vector.shape_cast %40 : vector<12x128xf32> to vector<1x12x128xf32>
    tpu.vector_store %arg5[%c7, %c0_28, %c0_29], %43 {strides = array<i32>} : memref<8x12x128xf32, #tpu.memory_space<vmem>>, vector<1x12x128xf32>,
    return
  }
  func.func @transform_0(%arg0: i32, %arg1: i32) -> (i32, i32) {
    %c0_i32 = arith.constant 0 : i32
    %c0_i32_0 = arith.constant 0 : i32
    return %arg1, %c0_i32 : i32, i32
  }
  func.func @transform_1(%arg0: i32, %arg1: i32) -> (i32, i32) {
    %c0_i32 = arith.constant 0 : i32
    %c0_i32_0 = arith.constant 0 : i32
    return %c0_i32, %arg0 : i32, i32
  }
  func.func @transform_2(%arg0: i32, %arg1: i32) -> (i32, i32) {
    %c0_i32 = arith.constant 0 : i32
    %c0_i32_0 = arith.constant 0 : i32
    %c0_i32_1 = arith.constant 0 : i32
    return %c0_i32, %c0_i32_0 : i32, i32
  }
  func.func @transform_3(%arg0: i32, %arg1: i32) -> (i32, i32, i32) {
    %c0_i32 = arith.constant 0 : i32
    %c0_i32_0 = arith.constant 0 : i32
    return %arg1, %c0_i32, %arg0 : i32, i32, i32
  }
}

</mosaic_0001>

<llo_original>
// kernel: tpu_custom_call.1
$region0: #{tpu_custom_call.1}
  #allocation0 [shape = 'u32[]', space=smem, size = 0x4, offset = 0x4, fixed_abs, tag = 'smem constant byte address 0x4 - core index']
  #allocation1 [shape = 'u32[144,128]{1,0:T(1,128)}', space=vmem, size = 0x12000, scoped, tag = 'internal scratch']
  %s0 = inlined_call_operand.hbm [shape: f32[64,64], index: 0, kind: input, shape index: {}]
  %s1 = inlined_call_operand.hbm [shape: f32[64,256], index: 1, kind: input, shape index: {}]
  %s2 = inlined_call_operand.vmem [shape: f32[12,8], index: 2, kind: input, shape index: {}]
  %s3 = inlined_call_operand.vmem [shape: f32[8,12,256], index: 3, kind: output, shape index: {}]
  %s4 = sld [smem:[#allocation0]]
  $region87: #{tpu_custom_call.1} parent=0
    _
  %s6 = ssub.s32 1, %s4
  %s7 = scalar_select 0, %s6, %s4
  $region1: #{tpu_custom_call.1} parent=0
    #allocation2 [shape = 'u8[32768]{0}', space=vmem, size = 0x8000, scoped, tag = 'input window, operand 0, single buffered']
    #allocation3 [shape = 's32[2]{0}', space=sflag, size = 0x8, scoped, tag = 'scoped memory for tpu_custom_call.1']
    #allocation4 [shape = 'u8[65536]{0}', space=vmem, size = 0x10000, scoped, tag = 'input window, operand 1']
    #allocation5 [shape = 's32[2]{0}', space=sflag, size = 0x8, scoped, tag = 'scoped memory for tpu_custom_call.1']
    #allocation6 [shape = 'u8[131072]{0}', space=vmem, size = 0x20000, scoped, tag = 'output window, operand 0']
    %8 = vsyncpa [#allocation3], 0
    %9 = vsyncpa [#allocation5], 0
    %s10 = scalar_lea.sflag [#allocation5], 1
    %11 = vsyncpa %s10, 0
    loop: start=0, step=1, limit=4
    $region2: #{tpu_custom_call.1} parent=1 // loop_pre_header
      _
    $region3: #{tpu_custom_call.1} parent=1 // loop_header
      %s13 = sphi 0, %s17
      %p14 = scmp.ge.s32.totalorder %s13, 4
      %s20 = sphi 0, %s32
      %s21 = sphi 0, %s28
      %s22 = sphi 0, %s20
      %s23 = sphi 0, %s21
      %s24 = sphi 0, %s22
      %s25 = sphi 0, %s23
      %s35 = sphi 0, %s37
      %s38 = sphi 0, %s35
      %s39 = sphi 0, %s38
      %s55 = sphi 0, %s39
      %s61 = sphi 0, %s63
      %s64 = sphi 0, %s61
      %s65 = sphi 0, %s64
      %s81 = sphi 0, %s65
      %s85 = sphi 0, %s85
      %s87 = sphi 0, %s85
      %s88 = sphi 0, %s87
      %s102 = sphi 0, %s88
      %s110 = sphi 0, %s112
      %s113 = sphi 0, %s110
      %s114 = sphi 0, %s113
      %s130 = sphi 0, %s114
    $region4: #{tpu_custom_call.1} parent=1 // loop_header_branch
      %16 = sbr.rel (%p14) target = $region8
    $region5: #{tpu_custom_call.1} parent=1 // loop_body
      %s18 = ssub.s32 %s13, 1
      %s19 = ssub.s32 %s13, 2
      %s26 = sadd.s32 1, %s21
      %p27 = scmp.ge.s32.totalorder %s26, 1
      %s28 = scalar_select %p27, 0, %s26
      %s29 = sadd.s32 1, %s20
      %s30 = scalar_select %p27, %s29, %s20
      %p31 = scmp.ge.s32.totalorder %s30, 2
      %s32 = scalar_select %p31, 0, %s30
      %s33 = ssub.s32 %s21, %s28
      %p34 = scmp.eq.s32.totalorder %s33, 0
      %s36 = sadd.s32 %s35, 1
      %s37 = scalar_select %p34, %s35, %s36
      %p40 = pneg %p34
      %p41 = scmp.eq.s32.totalorder %s13, 1
      %p42 = por %p40, %p41
      %p43 = scmp.ne.s32.totalorder %s35, %s38
      %p44 = scmp.eq.s32.totalorder %s13, 0
      %p45 = por %p43, %p44
      %p46 = scmp.ne.s32.totalorder %s35, %s38
      %p47 = scmp.eq.s32.totalorder %s18, 1
      %p48 = por %p46, %p47
      %p49 = scmp.ne.s32.totalorder %s38, %s39
      %p50 = scmp.eq.s32.totalorder %s18, 0
      %p51 = por %p49, %p50
      %p52 = scmp.ne.s32.totalorder %s38, %s39
      %p53 = scmp.eq.s32.totalorder %s19, 1
      %p54 = por %p52, %p53
      %p56 = scmp.ne.s32.totalorder %s39, %s55
      %p57 = scmp.eq.s32.totalorder %s19, 0
      %p58 = por %p56, %p57
      %s59 = ssub.s32 %s20, %s32
      %p60 = scmp.eq.s32.totalorder %s59, 0
      %s62 = sadd.s32 %s61, 1
      %s63 = scalar_select %p60, %s61, %s62
      %p66 = pneg %p60
      %p67 = scmp.eq.s32.totalorder %s13, 1
      %p68 = por %p66, %p67
      %p69 = scmp.ne.s32.totalorder %s61, %s64
      %p70 = scmp.eq.s32.totalorder %s13, 0
      %p71 = por %p69, %p70
      %p72 = scmp.ne.s32.totalorder %s61, %s64
      %p73 = scmp.eq.s32.totalorder %s18, 1
      %p74 = por %p72, %p73
      %p75 = scmp.ne.s32.totalorder %s64, %s65
      %p76 = scmp.eq.s32.totalorder %s18, 0
      %p77 = por %p75, %p76
      %p78 = scmp.ne.s32.totalorder %s64, %s65
      %p79 = scmp.eq.s32.totalorder %s19, 1
      %p80 = por %p78, %p79
      %p82 = scmp.ne.s32.totalorder %s65, %s81
      %p83 = scmp.eq.s32.totalorder %s19, 0
      %p84 = por %p82, %p83
      %s86 = sadd.s32 %s85, 1
      %p89 = scmp.eq.s32.totalorder %s13, 1
      %p90 = scmp.ne.s32.totalorder %s85, %s87
      %p91 = scmp.eq.s32.totalorder %s13, 0
      %p92 = por %p90, %p91
      %p93 = scmp.ne.s32.totalorder %s85, %s87
      %p94 = scmp.eq.s32.totalorder %s18, 1
      %p95 = por %p93, %p94
      %p96 = scmp.ne.s32.totalorder %s87, %s88
      %p97 = scmp.eq.s32.totalorder %s18, 0
      %p98 = por %p96, %p97
      %p99 = scmp.ne.s32.totalorder %s87, %s88
      %p100 = scmp.eq.s32.totalorder %s19, 1
      %p101 = por %p99, %p100
      %p103 = scmp.ne.s32.totalorder %s88, %s102
      %p104 = scmp.eq.s32.totalorder %s19, 0
      %p105 = por %p103, %p104
      %s106 = ssub.s32 %s21, %s28
      %s107 = ssub.s32 %s20, %s32
      %s108 = sor.u32 %s106, %s107
      %p109 = scmp.eq.s32.totalorder %s108, 0
      %s111 = sadd.s32 %s110, 1
      %s112 = scalar_select %p109, %s110, %s111
      %p115 = pneg %p109
      %p116 = scmp.eq.s32.totalorder %s13, 1
      %p117 = por %p115, %p116
      %p118 = scmp.ne.s32.totalorder %s110, %s113
      %p119 = scmp.eq.s32.totalorder %s13, 0
      %p120 = por %p118, %p119
      %p121 = scmp.ne.s32.totalorder %s110, %s113
      %p122 = scmp.eq.s32.totalorder %s18, 1
      %p123 = por %p121, %p122
      %p124 = scmp.ne.s32.totalorder %s113, %s114
      %p125 = scmp.eq.s32.totalorder %s18, 0
      %p126 = por %p124, %p125
      %p127 = scmp.ne.s32.totalorder %s113, %s114
      %p128 = scmp.eq.s32.totalorder %s19, 1
      %p129 = por %p127, %p128
      %p131 = scmp.ne.s32.totalorder %s114, %s130
      %p132 = scmp.eq.s32.totalorder %s19, 0
      %p133 = por %p131, %p132
      %p134 = scmp.le.s32.totalorder 1, %s13
      %p135 = scmp.lt.s32.totalorder %s13, 3
      %p136 = pnand %p134, %p135
      %p137 = pneg %p136
      // Predicated region
      $region9: #{tpu_custom_call.1} parent=5 // pred_check
        _
      $region10: #{tpu_custom_call.1} parent=5 // pred_check_branch
        %139 = sbr.rel (%p136) target = $region12
      $region11: #{tpu_custom_call.1} parent=5 // pred_region
        %s140 = ssub.s32 %s13, 1
        // Predicated region
        $region13: #{tpu_custom_call.1} parent=11 // pred_check
          %p141 = pneg %p51
        $region14: #{tpu_custom_call.1} parent=11 // pred_check_branch
          %143 = sbr.rel (%p141) target = $region16
        $region15: #{tpu_custom_call.1} parent=11 // pred_region
          %s144 = smul.u32 8, %s23
          %s146 = ssub.s32 1024, 1024
          %147 = vsyncadd [#allocation3], %s146
          %s148 = smul.addr %s144, 128
          %s149 = scalar_lea.hbm %s0, %s148
          %s150 = sshll.u32 [#allocation2], 4
          %s151 = int_to_ptr.vmem [resolvable:$true] %s150
          %156 = dma.hbm_to_vmem [thread:$0]  %s149, 1024, %s151, [#allocation3], 128, 128, 8
        $region16: #{tpu_custom_call.1} parent=11 // pred_fallthru
          _
        // Predicated region
        $region17: #{tpu_custom_call.1} parent=11 // pred_check
          %p157 = pneg %p98
        $region18: #{tpu_custom_call.1} parent=11 // pred_check_branch
          %159 = sbr.rel (%p157) target = $region20
        $region19: #{tpu_custom_call.1} parent=11 // pred_region
          _
        $region20: #{tpu_custom_call.1} parent=11 // pred_fallthru
          _
      $region12: #{tpu_custom_call.1} parent=5 // pred_fallthru
        _
      %p160 = scmp.lt.s32.totalorder %s13, 2
      // Predicated region
      $region21: #{tpu_custom_call.1} parent=5 // pred_check
        %p161 = pneg %p160
      $region22: #{tpu_custom_call.1} parent=5 // pred_check_branch
        %163 = sbr.rel (%p161) target = $region24
      $region23: #{tpu_custom_call.1} parent=5 // pred_region
        // Predicated region
        $region25: #{tpu_custom_call.1} parent=23 // pred_check
          %p164 = pneg %p71
        $region26: #{tpu_custom_call.1} parent=23 // pred_check_branch
          %166 = sbr.rel (%p164) target = $region28
        $region27: #{tpu_custom_call.1} parent=23 // pred_region
          %s167 = sand.u32 %s61, 1
          %s168 = scalar_lea.sflag [#allocation5], %s167
          %s169 = sand.u32 %s61, 1
          %s170 = smul.addr %s169, 64
          %s171 = scalar_lea.vmem [#allocation4], %s170
          %s173 = ssub.s32 1024, 1024
          %174 = vsyncadd %s168, %s173
          %s175 = smul.addr %s20, 128
          %s176 = scalar_lea.hbm %s1, %s175
          %s177 = sshll.u32 %s171, 4
          %s178 = int_to_ptr.vmem [resolvable:$true] %s177
          %183 = dma.hbm_to_vmem [thread:$0]  %s176, 1024, %s178, %s168, 256, 128, 8
        $region28: #{tpu_custom_call.1} parent=23 // pred_fallthru
          _
      $region24: #{tpu_custom_call.1} parent=5 // pred_fallthru
        _
      %p184 = scmp.le.s32.totalorder 1, %s13
      %p185 = scmp.lt.s32.totalorder %s13, 3
      %p186 = pnand %p184, %p185
      %p187 = pneg %p186
      // Predicated region
      $region29: #{tpu_custom_call.1} parent=5 // pred_check
        _
      $region30: #{tpu_custom_call.1} parent=5 // pred_check_branch
        %189 = sbr.rel (%p186) target = $region32
      $region31: #{tpu_custom_call.1} parent=5 // pred_region
        %s190 = ssub.s32 %s13, 1
        // Predicated region
        $region33: #{tpu_custom_call.1} parent=31 // pred_check
          %p191 = pneg %p51
        $region34: #{tpu_custom_call.1} parent=31 // pred_check_branch
          %193 = sbr.rel (%p191) target = $region36
        $region35: #{tpu_custom_call.1} parent=31 // pred_region
          %194 = dma.done [#allocation3], 1024
        $region36: #{tpu_custom_call.1} parent=31 // pred_fallthru
          _
        %s195 = sand.u32 %s64, 1
        %s196 = scalar_lea.sflag [#allocation5], %s195
        %s197 = sand.u32 %s64, 1
        %s198 = smul.addr %s197, 64
        %s199 = scalar_lea.vmem [#allocation4], %s198
        // Predicated region
        $region37: #{tpu_custom_call.1} parent=31 // pred_check
          %p200 = pneg %p77
        $region38: #{tpu_custom_call.1} parent=31 // pred_check_branch
          %202 = sbr.rel (%p200) target = $region40
        $region39: #{tpu_custom_call.1} parent=31 // pred_region
          %203 = dma.done %s196, 1024
        $region40: #{tpu_custom_call.1} parent=31 // pred_fallthru
          _
        %p204 = pneg %p51
        %p205 = pneg %p48
        %s206 = sand.u32 %s64, 1
        %s207 = scalar_lea.sflag [#allocation5], %s206
        %s208 = sand.u32 %s64, 1
        %s209 = smul.addr %s208, 64
        %s210 = scalar_lea.vmem [#allocation4], %s209
        %p211 = pneg %p77
        %p212 = pneg %p74
        %p213 = pneg %p98
        %p214 = pneg %p95
        %p215 = pneg %p126
        %p216 = pneg %p123
        %s217 = sand.u32 %s113, 1
        %s218 = sand.u32 %s113, 1
        %s219 = smul.addr %s218, 128
        %s220 = scalar_lea.vmem [#allocation6], %s219
        %s221 = smul.u32 8, %s23
        %s222 = smul.u32 8, %s23
        %v223 = vld [vmem:[#allocation2] sm:$0xff]
        %v224 = vld [vmem:[#allocation2 + $0x8] sm:$0xff]
        %v225 = vld [vmem:[#allocation2 + $0x10] sm:$0xff]
        %v226 = vld [vmem:[#allocation2 + $0x18] sm:$0xff]
        %v227 = vld [vmem:[#allocation2 + $0x20] sm:$0xff]
        %v228 = vld [vmem:[#allocation2 + $0x28] sm:$0xff]
        %v229 = vld [vmem:[#allocation2 + $0x30] sm:$0xff]
        %v230 = vld [vmem:[#allocation2 + $0x38] sm:$0xff]
        %v231 = vld [vmem:[%s199] sm:$0xff]
        %v232 = vld [vmem:[%s199 + $0x8] sm:$0xff]
        %v233 = vld [vmem:[%s199 + $0x10] sm:$0xff]
        %v234 = vld [vmem:[%s199 + $0x18] sm:$0xff]
        %v235 = vld [vmem:[%s199 + $0x20] sm:$0xff]
        %v236 = vld [vmem:[%s199 + $0x28] sm:$0xff]
        %v237 = vld [vmem:[%s199 + $0x30] sm:$0xff]
        %v238 = vld [vmem:[%s199 + $0x38] sm:$0xff]
        %vm239 = vcmask 523264
        %v241 = vsel %vm239, %v223, 0
        %v244 = vsel %vm239, %v224, 0
        %v247 = vsel %vm239, %v225, 0
        %v250 = vsel %vm239, %v226, 0
        %v253 = vsel %vm239, %v227, 0
        %v256 = vsel %vm239, %v228, 0
        %v259 = vsel %vm239, %v229, 0
        %v262 = vsel %vm239, %v230, 0
        %264 = vmatprep.subr.mxu0 0.0
        %265 = vmatpush1.msra.mxu0 %v231
        %266 = vmatprep.subr.mxu0 0.0
        %267 = vmatpush1.msra.mxu0 %v232
        %268 = vmatprep.subr.mxu0 0.0
        %269 = vmatpush1.msra.mxu0 %v233
        %270 = vmatprep.subr.mxu0 0.0
        %271 = vmatpush1.msra.mxu0 %v234
        %272 = vmatprep.subr.mxu0 0.0
        %273 = vmatpush1.msra.mxu0 %v235
        %274 = vmatprep.subr.mxu0 0.0
        %275 = vmatpush1.msra.mxu0 %v236
        %276 = vmatprep.subr.mxu0 0.0
        %277 = vmatpush1.msra.mxu0 %v237
        %278 = vmatprep.subr.mxu0 0.0
        %279 = vmatpush1.msra.mxu0 %v238
        %280 = vmatprep.subr.mxu0 0.0
        %281 = vmatpush1.msra.mxu0 0.0
        %282 = vmatprep.subr.mxu0 0.0
        %283 = vmatpush1.msra.mxu0 0.0
        %284 = vmatprep.subr.mxu0 0.0
        %285 = vmatpush1.msra.mxu0 0.0
        %286 = vmatprep.subr.mxu0 0.0
        %287 = vmatpush1.msra.mxu0 0.0
        %288 = vmatprep.subr.mxu0 0.0
        %289 = vmatpush1.msra.mxu0 0.0
        %290 = vmatprep.subr.mxu0 0.0
        %291 = vmatpush1.msra.mxu0 0.0
        %292 = vmatprep.subr.mxu0 0.0
        %293 = vmatpush1.msra.mxu0 0.0
        %294 = vmatprep.subr.mxu0 0.0
        %295 = vmatpush1.msra.mxu0 0.0
        %296 = vmatprep.subr.mxu0 0.0
        %297 = vmatpush1.msra.mxu0 0.0
        %298 = vmatprep.subr.mxu0 0.0
        %299 = vmatpush1.msra.mxu0 0.0
        %300 = vmatprep.subr.mxu0 0.0
        %301 = vmatpush1.msra.mxu0 0.0
        %302 = vmatprep.subr.mxu0 0.0
        %303 = vmatpush1.msra.mxu0 0.0
        %304 = vmatprep.subr.mxu0 0.0
        %305 = vmatpush1.msra.mxu0 0.0
        %306 = vmatprep.subr.mxu0 0.0
        %307 = vmatpush1.msra.mxu0 0.0
        %308 = vmatprep.subr.mxu0 0.0
        %309 = vmatpush1.msra.mxu0 0.0
        %310 = vmatprep.subr.mxu0 0.0
        %311 = vmatpush1.msra.mxu0 0.0
        %312 = vmatprep.subr.mxu0 0.0
        %313 = vmatpush1.msra.mxu0 0.0
        %314 = vmatprep.subr.mxu0 0.0
        %315 = vmatpush1.msra.mxu0 0.0
        %316 = vmatprep.subr.mxu0 0.0
        %317 = vmatpush1.msra.mxu0 0.0
        %318 = vmatprep.subr.mxu0 0.0
        %319 = vmatpush1.msra.mxu0 0.0
        %320 = vmatprep.subr.mxu0 0.0
        %321 = vmatpush1.msra.mxu0 0.0
        %322 = vmatprep.subr.mxu0 0.0
        %323 = vmatpush1.msra.mxu0 0.0
        %324 = vmatprep.subr.mxu0 0.0
        %325 = vmatpush1.msra.mxu0 0.0
        %326 = vmatprep.subr.mxu0 0.0
        %327 = vmatpush1.msra.mxu0 0.0
        %328 = vmatprep.mubr.f32.mxu0 0.0
        %329 = vmatmul.mubr.f32.gmra.mrb[0].mxu0 %v241
        %v330 = vpop.f32.mrb[0].mxu0
        %v331 = vadd.f32 0.0, %v330
        %v332 = vpop.f32.mrb[0].mxu0
        %333 = vmatprep.mubr.f32.mxu0 0.0
        %334 = vmatmul.mubr.f32.gmra.mrb[0].mxu0 %v244
        %v335 = vpop.f32.mrb[0].mxu0
        %v336 = vadd.f32 0.0, %v335
        %v337 = vpop.f32.mrb[0].mxu0
        %338 = vmatprep.mubr.f32.mxu0 0.0
        %339 = vmatmul.mubr.f32.gmra.mrb[0].mxu0 %v247
        %v340 = vpop.f32.mrb[0].mxu0
        %v341 = vadd.f32 0.0, %v340
        %v342 = vpop.f32.mrb[0].mxu0
        %343 = vmatprep.mubr.f32.mxu0 0.0
        %344 = vmatmul.mubr.f32.gmra.mrb[0].mxu0 %v250
        %v345 = vpop.f32.mrb[0].mxu0
        %v346 = vadd.f32 0.0, %v345
        %v347 = vpop.f32.mrb[0].mxu0
        %348 = vmatprep.mubr.f32.mxu0 0.0
        %349 = vmatmul.mubr.f32.gmra.mrb[0].mxu0 %v253
        %v350 = vpop.f32.mrb[0].mxu0
        %v351 = vadd.f32 0.0, %v350
        %v352 = vpop.f32.mrb[0].mxu0
        %353 = vmatprep.mubr.f32.mxu0 0.0
        %354 = vmatmul.mubr.f32.gmra.mrb[0].mxu0 %v256
        %v355 = vpop.f32.mrb[0].mxu0
        %v356 = vadd.f32 0.0, %v355
        %v357 = vpop.f32.mrb[0].mxu0
        %358 = vmatprep.mubr.f32.mxu0 0.0
        %359 = vmatmul.mubr.f32.gmra.mrb[0].mxu0 %v259
        %v360 = vpop.f32.mrb[0].mxu0
        %v361 = vadd.f32 0.0, %v360
        %v362 = vpop.f32.mrb[0].mxu0
        %363 = vmatprep.mubr.f32.mxu0 0.0
        %364 = vmatmul.mubr.f32.gmra.mrb[0].mxu0 %v262
        %v365 = vpop.f32.mrb[0].mxu0
        %v366 = vadd.f32 0.0, %v365
        %v367 = vpop.f32.mrb[0].mxu0
        %368 = vdwg.mxu0
        %v369 = vld [vmem:[%s2] sm:$0xff]
        %v370 = vld [vmem:[%s2 + $0x8] sm:$0xf]
        %vm371 = vcmask 64512
        %v373 = vsel %vm371, %v369, 0
        %v376 = vsel %vm371, %v370, 0
        %378 = vmatprep.subr.mxu0 0.0
        %379 = vmatpush1.msra.mxu0 %v331
        %380 = vmatprep.subr.mxu0 0.0
        %381 = vmatpush1.msra.mxu0 0.0
        %382 = vmatprep.subr.mxu0 0.0
        %383 = vmatpush1.msra.mxu0 0.0
        %384 = vmatprep.subr.mxu0 0.0
        %385 = vmatpush1.msra.mxu0 0.0
        %386 = vmatprep.subr.mxu0 0.0
        %387 = vmatpush1.msra.mxu0 0.0
        %388 = vmatprep.subr.mxu0 0.0
        %389 = vmatpush1.msra.mxu0 0.0
        %390 = vmatprep.subr.mxu0 0.0
        %391 = vmatpush1.msra.mxu0 0.0
        %392 = vmatprep.subr.mxu0 0.0
        %393 = vmatpush1.msra.mxu0 0.0
        %394 = vmatprep.subr.mxu0 0.0
        %395 = vmatpush1.msra.mxu0 0.0
        %396 = vmatprep.subr.mxu0 0.0
        %397 = vmatpush1.msra.mxu0 0.0
        %398 = vmatprep.subr.mxu0 0.0
        %399 = vmatpush1.msra.mxu0 0.0
        %400 = vmatprep.subr.mxu0 0.0
        %401 = vmatpush1.msra.mxu0 0.0
        %402 = vmatprep.subr.mxu0 0.0
        %403 = vmatpush1.msra.mxu0 0.0
        %404 = vmatprep.subr.mxu0 0.0
        %405 = vmatpush1.msra.mxu0 0.0
        %406 = vmatprep.subr.mxu0 0.0
        %407 = vmatpush1.msra.mxu0 0.0
        %408 = vmatprep.subr.mxu0 0.0
        %409 = vmatpush1.msra.mxu0 0.0
        %410 = vmatprep.subr.mxu0 0.0
        %411 = vmatpush1.msra.mxu0 0.0
        %412 = vmatprep.subr.mxu0 0.0
        %413 = vmatpush1.msra.mxu0 0.0
        %414 = vmatprep.subr.mxu0 0.0
        %415 = vmatpush1.msra.mxu0 0.0
        %416 = vmatprep.subr.mxu0 0.0
        %417 = vmatpush1.msra.mxu0 0.0
        %418 = vmatprep.subr.mxu0 0.0
        %419 = vmatpush1.msra.mxu0 0.0
        %420 = vmatprep.subr.mxu0 0.0
        %421 = vmatpush1.msra.mxu0 0.0
        %422 = vmatprep.subr.mxu0 0.0
        %423 = vmatpush1.msra.mxu0 0.0
        %424 = vmatprep.subr.mxu0 0.0
        %425 = vmatpush1.msra.mxu0 0.0
        %426 = vmatprep.subr.mxu0 0.0
        %427 = vmatpush1.msra.mxu0 0.0
        %428 = vmatprep.subr.mxu0 0.0
        %429 = vmatpush1.msra.mxu0 0.0
        %430 = vmatprep.subr.mxu0 0.0
        %431 = vmatpush1.msra.mxu0 0.0
        %432 = vmatprep.subr.mxu0 0.0
        %433 = vmatpush1.msra.mxu0 0.0
        %434 = vmatprep.subr.mxu0 0.0
        %435 = vmatpush1.msra.mxu0 0.0
        %436 = vmatprep.subr.mxu0 0.0
        %437 = vmatpush1.msra.mxu0 0.0
        %438 = vmatprep.subr.mxu0 0.0
        %439 = vmatpush1.msra.mxu0 0.0
        %440 = vmatprep.subr.mxu0 0.0
        %441 = vmatpush1.msra.mxu0 0.0
        %442 = vmatprep.mubr.f32.mxu0 0.0
        %443 = vmatmul.mubr.f32.gmra.mrb[0].mxu0 %v373
        %v444 = vpop.f32.mrb[0].mxu0
        %v445 = vadd.f32 0.0, %v444
        %v446 = vpop.f32.mrb[0].mxu0
        %447 = vmatprep.mubr.f32.mxu0 0.0
        %448 = vmatmul.mubr.f32.gmra.mrb[0].mxu0 %v376
        %v449 = vpop.f32.mrb[0].mxu0
        %v450 = vadd.f32 0.0, %v449
        %v451 = vpop.f32.mrb[0].mxu0
        %452 = vdwg.mxu0
        %453 = vst [vmem:[%s220] sm:$0xff] %v445
        %454 = vst [vmem:[%s220 + $0x8] sm:$0xf] %v450
        %455 = vmatprep.subr.mxu0 0.0
        %456 = vmatpush1.msra.mxu0 %v336
        %457 = vmatprep.subr.mxu0 0.0
        %458 = vmatpush1.msra.mxu0 0.0
        %459 = vmatprep.subr.mxu0 0.0
        %460 = vmatpush1.msra.mxu0 0.0
        %461 = vmatprep.subr.mxu0 0.0
        %462 = vmatpush1.msra.mxu0 0.0
        %463 = vmatprep.subr.mxu0 0.0
        %464 = vmatpush1.msra.mxu0 0.0
        %465 = vmatprep.subr.mxu0 0.0
        %466 = vmatpush1.msra.mxu0 0.0
        %467 = vmatprep.subr.mxu0 0.0
        %468 = vmatpush1.msra.mxu0 0.0
        %469 = vmatprep.subr.mxu0 0.0
        %470 = vmatpush1.msra.mxu0 0.0
        %471 = vmatprep.subr.mxu0 0.0
        %472 = vmatpush1.msra.mxu0 0.0
        %473 = vmatprep.subr.mxu0 0.0
        %474 = vmatpush1.msra.mxu0 0.0
        %475 = vmatprep.subr.mxu0 0.0
        %476 = vmatpush1.msra.mxu0 0.0
        %477 = vmatprep.subr.mxu0 0.0
        %478 = vmatpush1.msra.mxu0 0.0
        %479 = vmatprep.subr.mxu0 0.0
        %480 = vmatpush1.msra.mxu0 0.0
        %481 = vmatprep.subr.mxu0 0.0
        %482 = vmatpush1.msra.mxu0 0.0
        %483 = vmatprep.subr.mxu0 0.0
        %484 = vmatpush1.msra.mxu0 0.0
        %485 = vmatprep.subr.mxu0 0.0
        %486 = vmatpush1.msra.mxu0 0.0
        %487 = vmatprep.subr.mxu0 0.0
        %488 = vmatpush1.msra.mxu0 0.0
        %489 = vmatprep.subr.mxu0 0.0
        %490 = vmatpush1.msra.mxu0 0.0
        %491 = vmatprep.subr.mxu0 0.0
        %492 = vmatpush1.msra.mxu0 0.0
        %493 = vmatprep.subr.mxu0 0.0
        %494 = vmatpush1.msra.mxu0 0.0
        %495 = vmatprep.subr.mxu0 0.0
        %496 = vmatpush1.msra.mxu0 0.0
        %497 = vmatprep.subr.mxu0 0.0
        %498 = vmatpush1.msra.mxu0 0.0
        %499 = vmatprep.subr.mxu0 0.0
        %500 = vmatpush1.msra.mxu0 0.0
        %501 = vmatprep.subr.mxu0 0.0
        %502 = vmatpush1.msra.mxu0 0.0
        %503 = vmatprep.subr.mxu0 0.0
        %504 = vmatpush1.msra.mxu0 0.0
        %505 = vmatprep.subr.mxu0 0.0
        %506 = vmatpush1.msra.mxu0 0.0
        %507 = vmatprep.subr.mxu0 0.0
        %508 = vmatpush1.msra.mxu0 0.0
        %509 = vmatprep.subr.mxu0 0.0
        %510 = vmatpush1.msra.mxu0 0.0
        %511 = vmatprep.subr.mxu0 0.0
        %512 = vmatpush1.msra.mxu0 0.0
        %513 = vmatprep.subr.mxu0 0.0
        %514 = vmatpush1.msra.mxu0 0.0
        %515 = vmatprep.subr.mxu0 0.0
        %516 = vmatpush1.msra.mxu0 0.0
        %517 = vmatprep.subr.mxu0 0.0
        %518 = vmatpush1.msra.mxu0 0.0
        %519 = vmatprep.mubr.f32.mxu0 0.0
        %520 = vmatmul.mubr.f32.gmra.mrb[0].mxu0 %v373
        %v521 = vpop.f32.mrb[0].mxu0
        %v522 = vadd.f32 0.0, %v521
        %v523 = vpop.f32.mrb[0].mxu0
        %524 = vmatprep.mubr.f32.mxu0 0.0
        %525 = vmatmul.mubr.f32.gmra.mrb[0].mxu0 %v376
        %v526 = vpop.f32.mrb[0].mxu0
        %v527 = vadd.f32 0.0, %v526
        %v528 = vpop.f32.mrb[0].mxu0
        %529 = vdwg.mxu0
        %s530 = scalar_lea.vmem %s220, 16 [#allocation6]
        %531 = vst [vmem:[%s530] sm:$0xff] %v522
        %532 = vst [vmem:[%s530 + $0x8] sm:$0xf] %v527
        %533 = vmatprep.subr.mxu0 0.0
        %534 = vmatpush1.msra.mxu0 %v341
        %535 = vmatprep.subr.mxu0 0.0
        %536 = vmatpush1.msra.mxu0 0.0
        %537 = vmatprep.subr.mxu0 0.0
        %538 = vmatpush1.msra.mxu0 0.0
        %539 = vmatprep.subr.mxu0 0.0
        %540 = vmatpush1.msra.mxu0 0.0
        %541 = vmatprep.subr.mxu0 0.0
        %542 = vmatpush1.msra.mxu0 0.0
        %543 = vmatprep.subr.mxu0 0.0
        %544 = vmatpush1.msra.mxu0 0.0
        %545 = vmatprep.subr.mxu0 0.0
        %546 = vmatpush1.msra.mxu0 0.0
        %547 = vmatprep.subr.mxu0 0.0
        %548 = vmatpush1.msra.mxu0 0.0
        %549 = vmatprep.subr.mxu0 0.0
        %550 = vmatpush1.msra.mxu0 0.0
        %551 = vmatprep.subr.mxu0 0.0
        %552 = vmatpush1.msra.mxu0 0.0
        %553 = vmatprep.subr.mxu0 0.0
        %554 = vmatpush1.msra.mxu0 0.0
        %555 = vmatprep.subr.mxu0 0.0
        %556 = vmatpush1.msra.mxu0 0.0
        %557 = vmatprep.subr.mxu0 0.0
        %558 = vmatpush1.msra.mxu0 0.0
        %559 = vmatprep.subr.mxu0 0.0
        %560 = vmatpush1.msra.mxu0 0.0
        %561 = vmatprep.subr.mxu0 0.0
        %562 = vmatpush1.msra.mxu0 0.0
        %563 = vmatprep.subr.mxu0 0.0
        %564 = vmatpush1.msra.mxu0 0.0
        %565 = vmatprep.subr.mxu0 0.0
        %566 = vmatpush1.msra.mxu0 0.0
        %567 = vmatprep.subr.mxu0 0.0
        %568 = vmatpush1.msra.mxu0 0.0
        %569 = vmatprep.subr.mxu0 0.0
        %570 = vmatpush1.msra.mxu0 0.0
        %571 = vmatprep.subr.mxu0 0.0
        %572 = vmatpush1.msra.mxu0 0.0
        %573 = vmatprep.subr.mxu0 0.0
        %574 = vmatpush1.msra.mxu0 0.0
        %575 = vmatprep.subr.mxu0 0.0
        %576 = vmatpush1.msra.mxu0 0.0
        %577 = vmatprep.subr.mxu0 0.0
        %578 = vmatpush1.msra.mxu0 0.0
        %579 = vmatprep.subr.mxu0 0.0
        %580 = vmatpush1.msra.mxu0 0.0
        %581 = vmatprep.subr.mxu0 0.0
        %582 = vmatpush1.msra.mxu0 0.0
        %583 = vmatprep.subr.mxu0 0.0
        %584 = vmatpush1.msra.mxu0 0.0
        %585 = vmatprep.subr.mxu0 0.0
        %586 = vmatpush1.msra.mxu0 0.0
        %587 = vmatprep.subr.mxu0 0.0
        %588 = vmatpush1.msra.mxu0 0.0
        %589 = vmatprep.subr.mxu0 0.0
        %590 = vmatpush1.msra.mxu0 0.0
        %591 = vmatprep.subr.mxu0 0.0
        %592 = vmatpush1.msra.mxu0 0.0
        %593 = vmatprep.subr.mxu0 0.0
        %594 = vmatpush1.msra.mxu0 0.0
        %595 = vmatprep.subr.mxu0 0.0
        %596 = vmatpush1.msra.mxu0 0.0
        %597 = vmatprep.mubr.f32.mxu0 0.0
        %598 = vmatmul.mubr.f32.gmra.mrb[0].mxu0 %v373
        %v599 = vpop.f32.mrb[0].mxu0
        %v600 = vadd.f32 0.0, %v599
        %v601 = vpop.f32.mrb[0].mxu0
        %602 = vmatprep.mubr.f32.mxu0 0.0
        %603 = vmatmul.mubr.f32.gmra.mrb[0].mxu0 %v376
        %v604 = vpop.f32.mrb[0].mxu0
        %v605 = vadd.f32 0.0, %v604
        %v606 = vpop.f32.mrb[0].mxu0
        %607 = vdwg.mxu0
        %s608 = scalar_lea.vmem %s220, 32 [#allocation6]
        %609 = vst [vmem:[%s608] sm:$0xff] %v600
        %610 = vst [vmem:[%s608 + $0x8] sm:$0xf] %v605
        %611 = vmatprep.subr.mxu0 0.0
        %612 = vmatpush1.msra.mxu0 %v346
        %613 = vmatprep.subr.mxu0 0.0
        %614 = vmatpush1.msra.mxu0 0.0
        %615 = vmatprep.subr.mxu0 0.0
        %616 = vmatpush1.msra.mxu0 0.0
        %617 = vmatprep.subr.mxu0 0.0
        %618 = vmatpush1.msra.mxu0 0.0
        %619 = vmatprep.subr.mxu0 0.0
        %620 = vmatpush1.msra.mxu0 0.0
        %621 = vmatprep.subr.mxu0 0.0
        %622 = vmatpush1.msra.mxu0 0.0
        %623 = vmatprep.subr.mxu0 0.0
        %624 = vmatpush1.msra.mxu0 0.0
        %625 = vmatprep.subr.mxu0 0.0
        %626 = vmatpush1.msra.mxu0 0.0
        %627 = vmatprep.subr.mxu0 0.0
        %628 = vmatpush1.msra.mxu0 0.0
        %629 = vmatprep.subr.mxu0 0.0
        %630 = vmatpush1.msra.mxu0 0.0
        %631 = vmatprep.subr.mxu0 0.0
        %632 = vmatpush1.msra.mxu0 0.0
        %633 = vmatprep.subr.mxu0 0.0
        %634 = vmatpush1.msra.mxu0 0.0
        %635 = vmatprep.subr.mxu0 0.0
        %636 = vmatpush1.msra.mxu0 0.0
        %637 = vmatprep.subr.mxu0 0.0
        %638 = vmatpush1.msra.mxu0 0.0
        %639 = vmatprep.subr.mxu0 0.0
        %640 = vmatpush1.msra.mxu0 0.0
        %641 = vmatprep.subr.mxu0 0.0
        %642 = vmatpush1.msra.mxu0 0.0
        %643 = vmatprep.subr.mxu0 0.0
        %644 = vmatpush1.msra.mxu0 0.0
        %645 = vmatprep.subr.mxu0 0.0
        %646 = vmatpush1.msra.mxu0 0.0
        %647 = vmatprep.subr.mxu0 0.0
        %648 = vmatpush1.msra.mxu0 0.0
        %649 = vmatprep.subr.mxu0 0.0
        %650 = vmatpush1.msra.mxu0 0.0
        %651 = vmatprep.subr.mxu0 0.0
        %652 = vmatpush1.msra.mxu0 0.0
        %653 = vmatprep.subr.mxu0 0.0
        %654 = vmatpush1.msra.mxu0 0.0
        %655 = vmatprep.subr.mxu0 0.0
        %656 = vmatpush1.msra.mxu0 0.0
        %657 = vmatprep.subr.mxu0 0.0
        %658 = vmatpush1.msra.mxu0 0.0
        %659 = vmatprep.subr.mxu0 0.0
        %660 = vmatpush1.msra.mxu0 0.0
        %661 = vmatprep.subr.mxu0 0.0
        %662 = vmatpush1.msra.mxu0 0.0
        %663 = vmatprep.subr.mxu0 0.0
        %664 = vmatpush1.msra.mxu0 0.0
        %665 = vmatprep.subr.mxu0 0.0
        %666 = vmatpush1.msra.mxu0 0.0
        %667 = vmatprep.subr.mxu0 0.0
        %668 = vmatpush1.msra.mxu0 0.0
        %669 = vmatprep.subr.mxu0 0.0
        %670 = vmatpush1.msra.mxu0 0.0
        %671 = vmatprep.subr.mxu0 0.0
        %672 = vmatpush1.msra.mxu0 0.0
        %673 = vmatprep.subr.mxu0 0.0
        %674 = vmatpush1.msra.mxu0 0.0
        %675 = vmatprep.mubr.f32.mxu0 0.0
        %676 = vmatmul.mubr.f32.gmra.mrb[0].mxu0 %v373
        %v677 = vpop.f32.mrb[0].mxu0
        %v678 = vadd.f32 0.0, %v677
        %v679 = vpop.f32.mrb[0].mxu0
        %680 = vmatprep.mubr.f32.mxu0 0.0
        %681 = vmatmul.mubr.f32.gmra.mrb[0].mxu0 %v376
        %v682 = vpop.f32.mrb[0].mxu0
        %v683 = vadd.f32 0.0, %v682
        %v684 = vpop.f32.mrb[0].mxu0
        %685 = vdwg.mxu0
        %s686 = scalar_lea.vmem %s220, 48 [#allocation6]
        %687 = vst [vmem:[%s686] sm:$0xff] %v678
        %688 = vst [vmem:[%s686 + $0x8] sm:$0xf] %v683
        %689 = vmatprep.subr.mxu0 0.0
        %690 = vmatpush1.msra.mxu0 %v351
        %691 = vmatprep.subr.mxu0 0.0
        %692 = vmatpush1.msra.mxu0 0.0
        %693 = vmatprep.subr.mxu0 0.0
        %694 = vmatpush1.msra.mxu0 0.0
        %695 = vmatprep.subr.mxu0 0.0
        %696 = vmatpush1.msra.mxu0 0.0
        %697 = vmatprep.subr.mxu0 0.0
        %698 = vmatpush1.msra.mxu0 0.0
        %699 = vmatprep.subr.mxu0 0.0
        %700 = vmatpush1.msra.mxu0 0.0
        %701 = vmatprep.subr.mxu0 0.0
        %702 = vmatpush1.msra.mxu0 0.0
        %703 = vmatprep.subr.mxu0 0.0
        %704 = vmatpush1.msra.mxu0 0.0
        %705 = vmatprep.subr.mxu0 0.0
        %706 = vmatpush1.msra.mxu0 0.0
        %707 = vmatprep.subr.mxu0 0.0
        %708 = vmatpush1.msra.mxu0 0.0
        %709 = vmatprep.subr.mxu0 0.0
        %710 = vmatpush1.msra.mxu0 0.0
        %711 = vmatprep.subr.mxu0 0.0
        %712 = vmatpush1.msra.mxu0 0.0
        %713 = vmatprep.subr.mxu0 0.0
        %714 = vmatpush1.msra.mxu0 0.0
        %715 = vmatprep.subr.mxu0 0.0
        %716 = vmatpush1.msra.mxu0 0.0
        %717 = vmatprep.subr.mxu0 0.0
        %718 = vmatpush1.msra.mxu0 0.0
        %719 = vmatprep.subr.mxu0 0.0
        %720 = vmatpush1.msra.mxu0 0.0
        %721 = vmatprep.subr.mxu0 0.0
        %722 = vmatpush1.msra.mxu0 0.0
        %723 = vmatprep.subr.mxu0 0.0
        %724 = vmatpush1.msra.mxu0 0.0
        %725 = vmatprep.subr.mxu0 0.0
        %726 = vmatpush1.msra.mxu0 0.0
        %727 = vmatprep.subr.mxu0 0.0
        %728 = vmatpush1.msra.mxu0 0.0
        %729 = vmatprep.subr.mxu0 0.0
        %730 = vmatpush1.msra.mxu0 0.0
        %731 = vmatprep.subr.mxu0 0.0
        %732 = vmatpush1.msra.mxu0 0.0
        %733 = vmatprep.subr.mxu0 0.0
        %734 = vmatpush1.msra.mxu0 0.0
        %735 = vmatprep.subr.mxu0 0.0
        %736 = vmatpush1.msra.mxu0 0.0
        %737 = vmatprep.subr.mxu0 0.0
        %738 = vmatpush1.msra.mxu0 0.0
        %739 = vmatprep.subr.mxu0 0.0
        %740 = vmatpush1.msra.mxu0 0.0
        %741 = vmatprep.subr.mxu0 0.0
        %742 = vmatpush1.msra.mxu0 0.0
        %743 = vmatprep.subr.mxu0 0.0
        %744 = vmatpush1.msra.mxu0 0.0
        %745 = vmatprep.subr.mxu0 0.0
        %746 = vmatpush1.msra.mxu0 0.0
        %747 = vmatprep.subr.mxu0 0.0
        %748 = vmatpush1.msra.mxu0 0.0
        %749 = vmatprep.subr.mxu0 0.0
        %750 = vmatpush1.msra.mxu0 0.0
        %751 = vmatprep.subr.mxu0 0.0
        %752 = vmatpush1.msra.mxu0 0.0
        %753 = vmatprep.mubr.f32.mxu0 0.0
        %754 = vmatmul.mubr.f32.gmra.mrb[0].mxu0 %v373
        %v755 = vpop.f32.mrb[0].mxu0
        %v756 = vadd.f32 0.0, %v755
        %v757 = vpop.f32.mrb[0].mxu0
        %758 = vmatprep.mubr.f32.mxu0 0.0
        %759 = vmatmul.mubr.f32.gmra.mrb[0].mxu0 %v376
        %v760 = vpop.f32.mrb[0].mxu0
        %v761 = vadd.f32 0.0, %v760
        %v762 = vpop.f32.mrb[0].mxu0
        %763 = vdwg.mxu0
        %s764 = scalar_lea.vmem %s220, 64 [#allocation6]
        %765 = vst [vmem:[%s764] sm:$0xff] %v756
        %766 = vst [vmem:[%s764 + $0x8] sm:$0xf] %v761
        %767 = vmatprep.subr.mxu0 0.0
        %768 = vmatpush1.msra.mxu0 %v356
        %769 = vmatprep.subr.mxu0 0.0
        %770 = vmatpush1.msra.mxu0 0.0
        %771 = vmatprep.subr.mxu0 0.0
        %772 = vmatpush1.msra.mxu0 0.0
        %773 = vmatprep.subr.mxu0 0.0
        %774 = vmatpush1.msra.mxu0 0.0
        %775 = vmatprep.subr.mxu0 0.0
        %776 = vmatpush1.msra.mxu0 0.0
        %777 = vmatprep.subr.mxu0 0.0
        %778 = vmatpush1.msra.mxu0 0.0
        %779 = vmatprep.subr.mxu0 0.0
        %780 = vmatpush1.msra.mxu0 0.0
        %781 = vmatprep.subr.mxu0 0.0
        %782 = vmatpush1.msra.mxu0 0.0
        %783 = vmatprep.subr.mxu0 0.0
        %784 = vmatpush1.msra.mxu0 0.0
        %785 = vmatprep.subr.mxu0 0.0
        %786 = vmatpush1.msra.mxu0 0.0
        %787 = vmatprep.subr.mxu0 0.0
        %788 = vmatpush1.msra.mxu0 0.0
        %789 = vmatprep.subr.mxu0 0.0
        %790 = vmatpush1.msra.mxu0 0.0
        %791 = vmatprep.subr.mxu0 0.0
        %792 = vmatpush1.msra.mxu0 0.0
        %793 = vmatprep.subr.mxu0 0.0
        %794 = vmatpush1.msra.mxu0 0.0
        %795 = vmatprep.subr.mxu0 0.0
        %796 = vmatpush1.msra.mxu0 0.0
        %797 = vmatprep.subr.mxu0 0.0
        %798 = vmatpush1.msra.mxu0 0.0
        %799 = vmatprep.subr.mxu0 0.0
        %800 = vmatpush1.msra.mxu0 0.0
        %801 = vmatprep.subr.mxu0 0.0
        %802 = vmatpush1.msra.mxu0 0.0
        %803 = vmatprep.subr.mxu0 0.0
        %804 = vmatpush1.msra.mxu0 0.0
        %805 = vmatprep.subr.mxu0 0.0
        %806 = vmatpush1.msra.mxu0 0.0
        %807 = vmatprep.subr.mxu0 0.0
        %808 = vmatpush1.msra.mxu0 0.0
        %809 = vmatprep.subr.mxu0 0.0
        %810 = vmatpush1.msra.mxu0 0.0
        %811 = vmatprep.subr.mxu0 0.0
        %812 = vmatpush1.msra.mxu0 0.0
        %813 = vmatprep.subr.mxu0 0.0
        %814 = vmatpush1.msra.mxu0 0.0
        %815 = vmatprep.subr.mxu0 0.0
        %816 = vmatpush1.msra.mxu0 0.0
        %817 = vmatprep.subr.mxu0 0.0
        %818 = vmatpush1.msra.mxu0 0.0
        %819 = vmatprep.subr.mxu0 0.0
        %820 = vmatpush1.msra.mxu0 0.0
        %821 = vmatprep.subr.mxu0 0.0
        %822 = vmatpush1.msra.mxu0 0.0
        %823 = vmatprep.subr.mxu0 0.0
        %824 = vmatpush1.msra.mxu0 0.0
        %825 = vmatprep.subr.mxu0 0.0
        %826 = vmatpush1.msra.mxu0 0.0
        %827 = vmatprep.subr.mxu0 0.0
        %828 = vmatpush1.msra.mxu0 0.0
        %829 = vmatprep.subr.mxu0 0.0
        %830 = vmatpush1.msra.mxu0 0.0
        %831 = vmatprep.mubr.f32.mxu0 0.0
        %832 = vmatmul.mubr.f32.gmra.mrb[0].mxu0 %v373
        %v833 = vpop.f32.mrb[0].mxu0
        %v834 = vadd.f32 0.0, %v833
        %v835 = vpop.f32.mrb[0].mxu0
        %836 = vmatprep.mubr.f32.mxu0 0.0
        %837 = vmatmul.mubr.f32.gmra.mrb[0].mxu0 %v376
        %v838 = vpop.f32.mrb[0].mxu0
        %v839 = vadd.f32 0.0, %v838
        %v840 = vpop.f32.mrb[0].mxu0
        %841 = vdwg.mxu0
        %s842 = scalar_lea.vmem %s220, 80 [#allocation6]
        %843 = vst [vmem:[%s842] sm:$0xff] %v834
        %844 = vst [vmem:[%s842 + $0x8] sm:$0xf] %v839
        %845 = vmatprep.subr.mxu0 0.0
        %846 = vmatpush1.msra.mxu0 %v361
        %847 = vmatprep.subr.mxu0 0.0
        %848 = vmatpush1.msra.mxu0 0.0
        %849 = vmatprep.subr.mxu0 0.0
        %850 = vmatpush1.msra.mxu0 0.0
        %851 = vmatprep.subr.mxu0 0.0
        %852 = vmatpush1.msra.mxu0 0.0
        %853 = vmatprep.subr.mxu0 0.0
        %854 = vmatpush1.msra.mxu0 0.0
        %855 = vmatprep.subr.mxu0 0.0
        %856 = vmatpush1.msra.mxu0 0.0
        %857 = vmatprep.subr.mxu0 0.0
        %858 = vmatpush1.msra.mxu0 0.0
        %859 = vmatprep.subr.mxu0 0.0
        %860 = vmatpush1.msra.mxu0 0.0
        %861 = vmatprep.subr.mxu0 0.0
        %862 = vmatpush1.msra.mxu0 0.0
        %863 = vmatprep.subr.mxu0 0.0
        %864 = vmatpush1.msra.mxu0 0.0
        %865 = vmatprep.subr.mxu0 0.0
        %866 = vmatpush1.msra.mxu0 0.0
        %867 = vmatprep.subr.mxu0 0.0
        %868 = vmatpush1.msra.mxu0 0.0
        %869 = vmatprep.subr.mxu0 0.0
        %870 = vmatpush1.msra.mxu0 0.0
        %871 = vmatprep.subr.mxu0 0.0
        %872 = vmatpush1.msra.mxu0 0.0
        %873 = vmatprep.subr.mxu0 0.0
        %874 = vmatpush1.msra.mxu0 0.0
        %875 = vmatprep.subr.mxu0 0.0
        %876 = vmatpush1.msra.mxu0 0.0
        %877 = vmatprep.subr.mxu0 0.0
        %878 = vmatpush1.msra.mxu0 0.0
        %879 = vmatprep.subr.mxu0 0.0
        %880 = vmatpush1.msra.mxu0 0.0
        %881 = vmatprep.subr.mxu0 0.0
        %882 = vmatpush1.msra.mxu0 0.0
        %883 = vmatprep.subr.mxu0 0.0
        %884 = vmatpush1.msra.mxu0 0.0
        %885 = vmatprep.subr.mxu0 0.0
        %886 = vmatpush1.msra.mxu0 0.0
        %887 = vmatprep.subr.mxu0 0.0
        %888 = vmatpush1.msra.mxu0 0.0
        %889 = vmatprep.subr.mxu0 0.0
        %890 = vmatpush1.msra.mxu0 0.0
        %891 = vmatprep.subr.mxu0 0.0
        %892 = vmatpush1.msra.mxu0 0.0
        %893 = vmatprep.subr.mxu0 0.0
        %894 = vmatpush1.msra.mxu0 0.0
        %895 = vmatprep.subr.mxu0 0.0
        %896 = vmatpush1.msra.mxu0 0.0
        %897 = vmatprep.subr.mxu0 0.0
        %898 = vmatpush1.msra.mxu0 0.0
        %899 = vmatprep.subr.mxu0 0.0
        %900 = vmatpush1.msra.mxu0 0.0
        %901 = vmatprep.subr.mxu0 0.0
        %902 = vmatpush1.msra.mxu0 0.0
        %903 = vmatprep.subr.mxu0 0.0
        %904 = vmatpush1.msra.mxu0 0.0
        %905 = vmatprep.subr.mxu0 0.0
        %906 = vmatpush1.msra.mxu0 0.0
        %907 = vmatprep.subr.mxu0 0.0
        %908 = vmatpush1.msra.mxu0 0.0
        %909 = vmatprep.mubr.f32.mxu0 0.0
        %910 = vmatmul.mubr.f32.gmra.mrb[0].mxu0 %v373
        %v911 = vpop.f32.mrb[0].mxu0
        %v912 = vadd.f32 0.0, %v911
        %v913 = vpop.f32.mrb[0].mxu0
        %914 = vmatprep.mubr.f32.mxu0 0.0
        %915 = vmatmul.mubr.f32.gmra.mrb[0].mxu0 %v376
        %v916 = vpop.f32.mrb[0].mxu0
        %v917 = vadd.f32 0.0, %v916
        %v918 = vpop.f32.mrb[0].mxu0
        %919 = vdwg.mxu0
        %s920 = scalar_lea.vmem %s220, 96 [#allocation6]
        %921 = vst [vmem:[%s920] sm:$0xff] %v912
        %922 = vst [vmem:[%s920 + $0x8] sm:$0xf] %v917
        %923 = vmatprep.subr.mxu0 0.0
        %924 = vmatpush1.msra.mxu0 %v366
        %925 = vmatprep.subr.mxu0 0.0
        %926 = vmatpush1.msra.mxu0 0.0
        %927 = vmatprep.subr.mxu0 0.0
        %928 = vmatpush1.msra.mxu0 0.0
        %929 = vmatprep.subr.mxu0 0.0
        %930 = vmatpush1.msra.mxu0 0.0
        %931 = vmatprep.subr.mxu0 0.0
        %932 = vmatpush1.msra.mxu0 0.0
        %933 = vmatprep.subr.mxu0 0.0
        %934 = vmatpush1.msra.mxu0 0.0
        %935 = vmatprep.subr.mxu0 0.0
        %936 = vmatpush1.msra.mxu0 0.0
        %937 = vmatprep.subr.mxu0 0.0
        %938 = vmatpush1.msra.mxu0 0.0
        %939 = vmatprep.subr.mxu0 0.0
        %940 = vmatpush1.msra.mxu0 0.0
        %941 = vmatprep.subr.mxu0 0.0
        %942 = vmatpush1.msra.mxu0 0.0
        %943 = vmatprep.subr.mxu0 0.0
        %944 = vmatpush1.msra.mxu0 0.0
        %945 = vmatprep.subr.mxu0 0.0
        %946 = vmatpush1.msra.mxu0 0.0
        %947 = vmatprep.subr.mxu0 0.0
        %948 = vmatpush1.msra.mxu0 0.0
        %949 = vmatprep.subr.mxu0 0.0
        %950 = vmatpush1.msra.mxu0 0.0
        %951 = vmatprep.subr.mxu0 0.0
        %952 = vmatpush1.msra.mxu0 0.0
        %953 = vmatprep.subr.mxu0 0.0
        %954 = vmatpush1.msra.mxu0 0.0
        %955 = vmatprep.subr.mxu0 0.0
        %956 = vmatpush1.msra.mxu0 0.0
        %957 = vmatprep.subr.mxu0 0.0
        %958 = vmatpush1.msra.mxu0 0.0
        %959 = vmatprep.subr.mxu0 0.0
        %960 = vmatpush1.msra.mxu0 0.0
        %961 = vmatprep.subr.mxu0 0.0
        %962 = vmatpush1.msra.mxu0 0.0
        %963 = vmatprep.subr.mxu0 0.0
        %964 = vmatpush1.msra.mxu0 0.0
        %965 = vmatprep.subr.mxu0 0.0
        %966 = vmatpush1.msra.mxu0 0.0
        %967 = vmatprep.subr.mxu0 0.0
        %968 = vmatpush1.msra.mxu0 0.0
        %969 = vmatprep.subr.mxu0 0.0
        %970 = vmatpush1.msra.mxu0 0.0
        %971 = vmatprep.subr.mxu0 0.0
        %972 = vmatpush1.msra.mxu0 0.0
        %973 = vmatprep.subr.mxu0 0.0
        %974 = vmatpush1.msra.mxu0 0.0
        %975 = vmatprep.subr.mxu0 0.0
        %976 = vmatpush1.msra.mxu0 0.0
        %977 = vmatprep.subr.mxu0 0.0
        %978 = vmatpush1.msra.mxu0 0.0
        %979 = vmatprep.subr.mxu0 0.0
        %980 = vmatpush1.msra.mxu0 0.0
        %981 = vmatprep.subr.mxu0 0.0
        %982 = vmatpush1.msra.mxu0 0.0
        %983 = vmatprep.subr.mxu0 0.0
        %984 = vmatpush1.msra.mxu0 0.0
        %985 = vmatprep.subr.mxu0 0.0
        %986 = vmatpush1.msra.mxu0 0.0
        %987 = vmatprep.mubr.f32.mxu0 0.0
        %988 = vmatmul.mubr.f32.gmra.mrb[0].mxu0 %v373
        %v989 = vpop.f32.mrb[0].mxu0
        %v990 = vadd.f32 0.0, %v989
        %v991 = vpop.f32.mrb[0].mxu0
        %992 = vmatprep.mubr.f32.mxu0 0.0
        %993 = vmatmul.mubr.f32.gmra.mrb[0].mxu0 %v376
        %v994 = vpop.f32.mrb[0].mxu0
        %v995 = vadd.f32 0.0, %v994
        %v996 = vpop.f32.mrb[0].mxu0
        %997 = vdwg.mxu0
        %s998 = scalar_lea.vmem %s220, 112 [#allocation6]
        %999 = vst [vmem:[%s998] sm:$0xff] %v990
        %1000 = vst [vmem:[%s998 + $0x8] sm:$0xf] %v995
        %s1001 = sand.u32 %s113, 1
        %s1002 = sand.u32 %s113, 1
        %s1003 = smul.addr %s1002, 128
        %s1004 = scalar_lea.vmem [#allocation6], %s1003
        // Predicated region
        $region41: #{tpu_custom_call.1} parent=31 // pred_check
          %p1005 = pneg %p123
        $region42: #{tpu_custom_call.1} parent=31 // pred_check_branch
          %1007 = sbr.rel (%p1005) target = $region44
        $region43: #{tpu_custom_call.1} parent=31 // pred_region
          %s1008 = smul.u32 8, %s23
          %s1009 = smul.addr %s1008, 4
          %s1010 = sadd.s32 %s22, %s1009
          %s1011 = smul.addr %s1010, 8
          %s1012 = scalar_lea.vmem %s3, %s1011
          // Predicated region
          $region45: #{tpu_custom_call.1} parent=43 // pred_check
            _
          $region46: #{tpu_custom_call.1} parent=43 // pred_check_branch
            %1014 = sbr.rel (0) target = $region48
          $region47: #{tpu_custom_call.1} parent=43 // pred_region
            // Predicated region
            $region49: #{tpu_custom_call.1} parent=47 // pred_check
              _
            $region50: #{tpu_custom_call.1} parent=47 // pred_check_branch
              %1016 = sbr.rel (0) target = $region52
            $region51: #{tpu_custom_call.1} parent=47 // pred_region
              // Predicated region
              $region64: #{tpu_custom_call.1} parent=51 // pred_check
                _
              $region65: #{tpu_custom_call.1} parent=51 // pred_check_branch
                %1061 = sbr.rel (0) target = $region67
              $region66: #{tpu_custom_call.1} parent=51 // pred_region
                loop: start=0, step=1, limit=1
                $region68: #{tpu_custom_call.1} parent=66 // loop_pre_header
                  _
                $region69: #{tpu_custom_call.1} parent=66 // loop_header
                  %s1063 = sphi 0, %s1067
                  %p1064 = scmp.ge.s32.totalorder %s1063, 1
                  %s1068 = sphi %s1004, %s1004
                  %s1069 = sphi %s1012, %s1012
                $region70: #{tpu_custom_call.1} parent=66 // loop_header_branch
                  %1066 = sbr.rel (%p1064) target = $region74
                $region71: #{tpu_custom_call.1} parent=66 // loop_body
                  %v1070 = vld [vmem:[%s1068] sm:$0xff]
                  %1071 = vst [vmem:[%s1069] sm:$0xff] %v1070
                  %v1072 = vld [vmem:[%s1068 + $0x8] sm:$0xff]
                  %1073 = vst [vmem:[%s1069 + $0x10] sm:$0xff] %v1072
                  %v1074 = vld [vmem:[%s1068 + $0x10] sm:$0xff]
                  %1075 = vst [vmem:[%s1069 + $0x20] sm:$0xff] %v1074
                  %v1076 = vld [vmem:[%s1068 + $0x18] sm:$0xff]
                  %1077 = vst [vmem:[%s1069 + $0x30] sm:$0xff] %v1076
                  %v1078 = vld [vmem:[%s1068 + $0x20] sm:$0xff]
                  %1079 = vst [vmem:[%s1069 + $0x40] sm:$0xff] %v1078
                  %v1080 = vld [vmem:[%s1068 + $0x28] sm:$0xff]
                  %1081 = vst [vmem:[%s1069 + $0x50] sm:$0xff] %v1080
                  %v1082 = vld [vmem:[%s1068 + $0x30] sm:$0xff]
                  %1083 = vst [vmem:[%s1069 + $0x60] sm:$0xff] %v1082
                  %v1084 = vld [vmem:[%s1068 + $0x38] sm:$0xff]
                  %1085 = vst [vmem:[%s1069 + $0x70] sm:$0xff] %v1084
                  %v1086 = vld [vmem:[%s1068 + $0x40] sm:$0xff]
                  %1087 = vst [vmem:[%s1069 + $0x80] sm:$0xff] %v1086
                  %v1088 = vld [vmem:[%s1068 + $0x48] sm:$0xff]
                  %1089 = vst [vmem:[%s1069 + $0x90] sm:$0xff] %v1088
                  %v1090 = vld [vmem:[%s1068 + $0x50] sm:$0xff]
                  %1091 = vst [vmem:[%s1069 + $0xa0] sm:$0xff] %v1090
                  %v1092 = vld [vmem:[%s1068 + $0x58] sm:$0xff]
                  %1093 = vst [vmem:[%s1069 + $0xb0] sm:$0xff] %v1092
                  %v1094 = vld [vmem:[%s1068 + $0x60] sm:$0xff]
                  %1095 = vst [vmem:[%s1069 + $0xc0] sm:$0xff] %v1094
                  %v1096 = vld [vmem:[%s1068 + $0x68] sm:$0xff]
                  %1097 = vst [vmem:[%s1069 + $0xd0] sm:$0xff] %v1096
                  %v1098 = vld [vmem:[%s1068 + $0x70] sm:$0xff]
                  %1099 = vst [vmem:[%s1069 + $0xe0] sm:$0xff] %v1098
                  %v1100 = vld [vmem:[%s1068 + $0x78] sm:$0xff]
                  %1101 = vst [vmem:[%s1069 + $0xf0] sm:$0xff] %v1100
                $region72: #{tpu_custom_call.1} parent=66 // loop_footer
                  %s1067 = sadd.s32 1, %s1063
                $region73: #{tpu_custom_call.1} parent=66 // loop_footer_branch
                  %1062 = sbr.rel target = $region69
                $region74: #{tpu_custom_call.1} parent=66 // loop_exit
                  _
              $region67: #{tpu_custom_call.1} parent=51 // pred_fallthru
                _
              // Predicated region
              $region75: #{tpu_custom_call.1} parent=51 // pred_check
                _
              $region76: #{tpu_custom_call.1} parent=51 // pred_check_branch
                %1103 = sbr.rel target = $region78
              $region77: #{tpu_custom_call.1} parent=51 // pred_region
                _
              $region78: #{tpu_custom_call.1} parent=51 // pred_fallthru
                _
            $region52: #{tpu_custom_call.1} parent=47 // pred_fallthru
              _
            // Predicated region
            $region53: #{tpu_custom_call.1} parent=47 // pred_check
              _
            $region54: #{tpu_custom_call.1} parent=47 // pred_check_branch
              %1018 = sbr.rel target = $region56
            $region55: #{tpu_custom_call.1} parent=47 // pred_region
              loop: start=0, step=1, limit=1
              $region57: #{tpu_custom_call.1} parent=55 // loop_pre_header
                _
              $region58: #{tpu_custom_call.1} parent=55 // loop_header
                %s1021 = sphi 0, %s1025
                %p1022 = scmp.ge.s32.totalorder %s1021, 1
                %s1026 = sphi %s1004, %s1004
                %s1027 = sphi %s1012, %s1012
              $region59: #{tpu_custom_call.1} parent=55 // loop_header_branch
                %1024 = sbr.rel (%p1022) target = $region63
              $region60: #{tpu_custom_call.1} parent=55 // loop_body
                %v1028 = vld [vmem:[%s1026] sm:$0xff]
                %1029 = vst [vmem:[%s1027] sm:$0xff] %v1028
                %v1030 = vld [vmem:[%s1026 + $0x8] sm:$0xff]
                %1031 = vst [vmem:[%s1027 + $0x10] sm:$0xff] %v1030
                %v1032 = vld [vmem:[%s1026 + $0x10] sm:$0xff]
                %1033 = vst [vmem:[%s1027 + $0x20] sm:$0xff] %v1032
                %v1034 = vld [vmem:[%s1026 + $0x18] sm:$0xff]
                %1035 = vst [vmem:[%s1027 + $0x30] sm:$0xff] %v1034
                %v1036 = vld [vmem:[%s1026 + $0x20] sm:$0xff]
                %1037 = vst [vmem:[%s1027 + $0x40] sm:$0xff] %v1036
                %v1038 = vld [vmem:[%s1026 + $0x28] sm:$0xff]
                %1039 = vst [vmem:[%s1027 + $0x50] sm:$0xff] %v1038
                %v1040 = vld [vmem:[%s1026 + $0x30] sm:$0xff]
                %1041 = vst [vmem:[%s1027 + $0x60] sm:$0xff] %v1040
                %v1042 = vld [vmem:[%s1026 + $0x38] sm:$0xff]
                %1043 = vst [vmem:[%s1027 + $0x70] sm:$0xff] %v1042
                %v1044 = vld [vmem:[%s1026 + $0x40] sm:$0xff]
                %1045 = vst [vmem:[%s1027 + $0x80] sm:$0xff] %v1044
                %v1046 = vld [vmem:[%s1026 + $0x48] sm:$0xff]
                %1047 = vst [vmem:[%s1027 + $0x90] sm:$0xff] %v1046
                %v1048 = vld [vmem:[%s1026 + $0x50] sm:$0xff]
                %1049 = vst [vmem:[%s1027 + $0xa0] sm:$0xff] %v1048
                %v1050 = vld [vmem:[%s1026 + $0x58] sm:$0xff]
                %1051 = vst [vmem:[%s1027 + $0xb0] sm:$0xff] %v1050
                %v1052 = vld [vmem:[%s1026 + $0x60] sm:$0xff]
                %1053 = vst [vmem:[%s1027 + $0xc0] sm:$0xff] %v1052
                %v1054 = vld [vmem:[%s1026 + $0x68] sm:$0xff]
                %1055 = vst [vmem:[%s1027 + $0xd0] sm:$0xff] %v1054
                %v1056 = vld [vmem:[%s1026 + $0x70] sm:$0xff]
                %1057 = vst [vmem:[%s1027 + $0xe0] sm:$0xff] %v1056
                %v1058 = vld [vmem:[%s1026 + $0x78] sm:$0xff]
                %1059 = vst [vmem:[%s1027 + $0xf0] sm:$0xff] %v1058
              $region61: #{tpu_custom_call.1} parent=55 // loop_footer
                %s1025 = sadd.s32 1, %s1021
              $region62: #{tpu_custom_call.1} parent=55 // loop_footer_branch
                %1020 = sbr.rel target = $region58
              $region63: #{tpu_custom_call.1} parent=55 // loop_exit
                _
            $region56: #{tpu_custom_call.1} parent=47 // pred_fallthru
              _
          $region48: #{tpu_custom_call.1} parent=43 // pred_fallthru
            _
          %1104 = vnop
        $region44: #{tpu_custom_call.1} parent=31 // pred_fallthru
          _
      $region32: #{tpu_custom_call.1} parent=5 // pred_fallthru
        _
      %p1105 = scmp.le.s32.totalorder 2, %s13
      // Predicated region
      $region79: #{tpu_custom_call.1} parent=5 // pred_check
        %p1106 = pneg %p1105
      $region80: #{tpu_custom_call.1} parent=5 // pred_check_branch
        %1108 = sbr.rel (%p1106) target = $region82
      $region81: #{tpu_custom_call.1} parent=5 // pred_region
        %s1109 = ssub.s32 %s13, 2
        // Predicated region
        $region83: #{tpu_custom_call.1} parent=81 // pred_check
          %p1110 = pneg %p129
        $region84: #{tpu_custom_call.1} parent=81 // pred_check_branch
          %1112 = sbr.rel (%p1110) target = $region86
        $region85: #{tpu_custom_call.1} parent=81 // pred_region
          %s1113 = sand.u32 %s114, 1
          %s1114 = sand.u32 %s114, 1
          %s1115 = smul.addr %s1114, 128
          %s1116 = scalar_lea.vmem [#allocation6], %s1115
        $region86: #{tpu_custom_call.1} parent=81 // pred_fallthru
          _
      $region82: #{tpu_custom_call.1} parent=5 // pred_fallthru
        _
    $region6: #{tpu_custom_call.1} parent=1 // loop_footer
      %s17 = sadd.s32 1, %s13
    $region7: #{tpu_custom_call.1} parent=1 // loop_footer_branch
      %12 = sbr.rel target = $region3
    $region8: #{tpu_custom_call.1} parent=1 // loop_exit
      _
    %1117 = vsyncpa [#allocation3], 1
    %s1118 = scalar_lea.sflag [#allocation3], 1
    %1119 = vsyncpa %s1118, 1
    %1120 = vsyncpa [#allocation5], 1
    %s1121 = scalar_lea.sflag [#allocation5], 1
    %1122 = vsyncpa %s1121, 1

// kernel: tpu_custom_call.1
$region0: #{tpu_custom_call.1}
  #allocation0 [shape = 'u32[]', space=smem, size = 0x4, offset = 0x4, fixed_abs, tag = 'smem constant byte address 0x4 - core index']
  #allocation1 [shape = 'u32[144,128]{1,0:T(1,128)}', space=vmem, size = 0x12000, scoped, tag = 'internal scratch']
  %s0 = inlined_call_operand.hbm [shape: f32[64,64], index: 0, kind: input, shape index: {}]
  %s1 = inlined_call_operand.hbm [shape: f32[64,256], index: 1, kind: input, shape index: {}]
  %s2 = inlined_call_operand.vmem [shape: f32[12,8], index: 2, kind: input, shape index: {}]
  %s3 = inlined_call_operand.vmem [shape: f32[8,12,256], index: 3, kind: output, shape index: {}]
  %s4 = sld [smem:[#allocation0]]
  $region87: #{tpu_custom_call.1} parent=0
    _
  %s6 = ssub.s32 1, %s4
  %s7 = scalar_select 0, %s6, %s4
  $region1: #{tpu_custom_call.1} parent=0
    #allocation2 [shape = 'u8[32768]{0}', space=vmem, size = 0x8000, scoped, tag = 'input window, operand 0, single buffered']
    #allocation3 [shape = 's32[2]{0}', space=sflag, size = 0x8, scoped, tag = 'scoped memory for tpu_custom_call.1']
    #allocation4 [shape = 'u8[65536]{0}', space=vmem, size = 0x10000, scoped, tag = 'input window, operand 1']
    #allocation5 [shape = 's32[2]{0}', space=sflag, size = 0x8, scoped, tag = 'scoped memory for tpu_custom_call.1']
    #allocation6 [shape = 'u8[131072]{0}', space=vmem, size = 0x20000, scoped, tag = 'output window, operand 0']
    %8 = vsyncpa [#allocation3], 0
    %9 = vsyncpa [#allocation5], 0
    %s10 = scalar_lea.sflag [#allocation5], 1
    %11 = vsyncpa %s10, 0
    loop: start=0, step=1, limit=4
    $region2: #{tpu_custom_call.1} parent=1 // loop_pre_header
      _
    $region3: #{tpu_custom_call.1} parent=1 // loop_header
      %s13 = sphi 0, %s17
      %p14 = scmp.ge.s32.totalorder %s13, 4
      %s20 = sphi 0, %s32
      %s21 = sphi 0, %s28
      %s22 = sphi 0, %s20
      %s23 = sphi 0, %s21
      %s24 = sphi 0, %s22
      %s25 = sphi 0, %s23
      %s35 = sphi 0, %s37
      %s38 = sphi 0, %s35
      %s39 = sphi 0, %s38
      %s55 = sphi 0, %s39
      %s61 = sphi 0, %s63
      %s64 = sphi 0, %s61
      %s65 = sphi 0, %s64
      %s81 = sphi 0, %s65
      %s85 = sphi 0, %s85
      %s87 = sphi 0, %s85
      %s88 = sphi 0, %s87
      %s102 = sphi 0, %s88
      %s110 = sphi 0, %s112
      %s113 = sphi 0, %s110
      %s114 = sphi 0, %s113
      %s130 = sphi 0, %s114
    $region4: #{tpu_custom_call.1} parent=1 // loop_header_branch
      %16 = sbr.rel (%p14) target = $region8
    $region5: #{tpu_custom_call.1} parent=1 // loop_body
      %s18 = ssub.s32 %s13, 1
      %s19 = ssub.s32 %s13, 2
      %s26 = sadd.s32 1, %s21
      %p27 = scmp.ge.s32.totalorder %s26, 1
      %s28 = scalar_select %p27, 0, %s26
      %s29 = sadd.s32 1, %s20
      %s30 = scalar_select %p27, %s29, %s20
      %p31 = scmp.ge.s32.totalorder %s30, 2
      %s32 = scalar_select %p31, 0, %s30
      %s33 = ssub.s32 %s21, %s28
      %p34 = scmp.eq.s32.totalorder %s33, 0
      %s36 = sadd.s32 %s35, 1
      %s37 = scalar_select %p34, %s35, %s36
      %p40 = pneg %p34
      %p41 = scmp.eq.s32.totalorder %s13, 1
      %p42 = por %p40, %p41
      %p43 = scmp.ne.s32.totalorder %s35, %s38
      %p44 = scmp.eq.s32.totalorder %s13, 0
      %p45 = por %p43, %p44
      %p46 = scmp.ne.s32.totalorder %s35, %s38
      %p47 = scmp.eq.s32.totalorder %s18, 1
      %p48 = por %p46, %p47
      %p49 = scmp.ne.s32.totalorder %s38, %s39
      %p50 = scmp.eq.s32.totalorder %s18, 0
      %p51 = por %p49, %p50
      %p52 = scmp.ne.s32.totalorder %s38, %s39
      %p53 = scmp.eq.s32.totalorder %s19, 1
      %p54 = por %p52, %p53
      %p56 = scmp.ne.s32.totalorder %s39, %s55
      %p57 = scmp.eq.s32.totalorder %s19, 0
      %p58 = por %p56, %p57
      %s59 = ssub.s32 %s20, %s32
      %p60 = scmp.eq.s32.totalorder %s59, 0
      %s62 = sadd.s32 %s61, 1
      %s63 = scalar_select %p60, %s61, %s62
      %p66 = pneg %p60
      %p67 = scmp.eq.s32.totalorder %s13, 1
      %p68 = por %p66, %p67
      %p69 = scmp.ne.s32.totalorder %s61, %s64
      %p70 = scmp.eq.s32.totalorder %s13, 0
      %p71 = por %p69, %p70
      %p72 = scmp.ne.s32.totalorder %s61, %s64
      %p73 = scmp.eq.s32.totalorder %s18, 1
      %p74 = por %p72, %p73
      %p75 = scmp.ne.s32.totalorder %s64, %s65
      %p76 = scmp.eq.s32.totalorder %s18, 0
      %p77 = por %p75, %p76
      %p78 = scmp.ne.s32.totalorder %s64, %s65
      %p79 = scmp.eq.s32.totalorder %s19, 1
      %p80 = por %p78, %p79
      %p82 = scmp.ne.s32.totalorder %s65, %s81
      %p83 = scmp.eq.s32.totalorder %s19, 0
      %p84 = por %p82, %p83
      %s86 = sadd.s32 %s85, 1
      %p89 = scmp.eq.s32.totalorder %s13, 1
      %p90 = scmp.ne.s32.totalorder %s85, %s87
      %p91 = scmp.eq.s32.totalorder %s13, 0
      %p92 = por %p90, %p91
      %p93 = scmp.ne.s32.totalorder %s85, %s87
      %p94 = scmp.eq.s32.totalorder %s18, 1
      %p95 = por %p93, %p94
      %p96 = scmp.ne.s32.totalorder %s87, %s88
      %p97 = scmp.eq.s32.totalorder %s18, 0
      %p98 = por %p96, %p97
      %p99 = scmp.ne.s32.totalorder %s87, %s88
      %p100 = scmp.eq.s32.totalorder %s19, 1
      %p101 = por %p99, %p100
      %p103 = scmp.ne.s32.totalorder %s88, %s102
      %p104 = scmp.eq.s32.totalorder %s19, 0
      %p105 = por %p103, %p104
      %s106 = ssub.s32 %s21, %s28
      %s107 = ssub.s32 %s20, %s32
      %s108 = sor.u32 %s106, %s107
      %p109 = scmp.eq.s32.totalorder %s108, 0
      %s111 = sadd.s32 %s110, 1
      %s112 = scalar_select %p109, %s110, %s111
      %p115 = pneg %p109
      %p116 = scmp.eq.s32.totalorder %s13, 1
      %p117 = por %p115, %p116
      %p118 = scmp.ne.s32.totalorder %s110, %s113
      %p119 = scmp.eq.s32.totalorder %s13, 0
      %p120 = por %p118, %p119
      %p121 = scmp.ne.s32.totalorder %s110, %s113
      %p122 = scmp.eq.s32.totalorder %s18, 1
      %p123 = por %p121, %p122
      %p124 = scmp.ne.s32.totalorder %s113, %s114
      %p125 = scmp.eq.s32.totalorder %s18, 0
      %p126 = por %p124, %p125
      %p127 = scmp.ne.s32.totalorder %s113, %s114
      %p128 = scmp.eq.s32.totalorder %s19, 1
      %p129 = por %p127, %p128
      %p131 = scmp.ne.s32.totalorder %s114, %s130
      %p132 = scmp.eq.s32.totalorder %s19, 0
      %p133 = por %p131, %p132
      %p134 = scmp.le.s32.totalorder 1, %s13
      %p135 = scmp.lt.s32.totalorder %s13, 3
      %p136 = pnand %p134, %p135
      %p137 = pneg %p136
      // Predicated region
      $region9: #{tpu_custom_call.1} parent=5 // pred_check
        _
      $region10: #{tpu_custom_call.1} parent=5 // pred_check_branch
        %139 = sbr.rel (%p136) target = $region12
      $region11: #{tpu_custom_call.1} parent=5 // pred_region
        %s140 = ssub.s32 %s13, 1
        // Predicated region
        $region13: #{tpu_custom_call.1} parent=11 // pred_check
          %p141 = pneg %p51
        $region14: #{tpu_custom_call.1} parent=11 // pred_check_branch
          %143 = sbr.rel (%p141) target = $region16
        $region15: #{tpu_custom_call.1} parent=11 // pred_region
          %s144 = smul.u32 8, %s23
          %s146 = ssub.s32 1024, 1024
          %147 = vsyncadd [#allocation3], %s146
          %s148 = smul.addr %s144, 128
          %s149 = scalar_lea.hbm %s0, %s148
          %s150 = sshll.u32 [#allocation2], 4
          %s151 = int_to_ptr.vmem [resolvable:$true] %s150
          %156 = dma.hbm_to_vmem [thread:$0]  %s149, 1024, %s151, [#allocation3], 128, 128, 8
        $region16: #{tpu_custom_call.1} parent=11 // pred_fallthru
          _
        // Predicated region
        $region17: #{tpu_custom_call.1} parent=11 // pred_check
          %p157 = pneg %p98
        $region18: #{tpu_custom_call.1} parent=11 // pred_check_branch
          %159 = sbr.rel (%p157) target = $region20
        $region19: #{tpu_custom_call.1} parent=11 // pred_region
          _
        $region20: #{tpu_custom_call.1} parent=11 // pred_fallthru
          _
      $region12: #{tpu_custom_call.1} parent=5 // pred_fallthru
        _
      %p160 = scmp.lt.s32.totalorder %s13, 2
      // Predicated region
      $region21: #{tpu_custom_call.1} parent=5 // pred_check
        %p161 = pneg %p160
      $region22: #{tpu_custom_call.1} parent=5 // pred_check_branch
        %163 = sbr.rel (%p161) target = $region24
      $region23: #{tpu_custom_call.1} parent=5 // pred_region
        // Predicated region
        $region25: #{tpu_custom_call.1} parent=23 // pred_check
          %p164 = pneg %p71
        $region26: #{tpu_custom_call.1} parent=23 // pred_check_branch
          %166 = sbr.rel (%p164) target = $region28
        $region27: #{tpu_custom_call.1} parent=23 // pred_region
          %s167 = sand.u32 %s61, 1
          %s168 = scalar_lea.sflag [#allocation5], %s167
          %s169 = sand.u32 %s61, 1
          %s170 = smul.addr %s169, 64
          %s171 = scalar_lea.vmem [#allocation4], %s170
          %s173 = ssub.s32 1024, 1024
          %174 = vsyncadd %s168, %s173
          %s175 = smul.addr %s20, 128
          %s176 = scalar_lea.hbm %s1, %s175
          %s177 = sshll.u32 %s171, 4
          %s178 = int_to_ptr.vmem [resolvable:$true] %s177
          %183 = dma.hbm_to_vmem [thread:$0]  %s176, 1024, %s178, %s168, 256, 128, 8
        $region28: #{tpu_custom_call.1} parent=23 // pred_fallthru
          _
      $region24: #{tpu_custom_call.1} parent=5 // pred_fallthru
        _
      %p184 = scmp.le.s32.totalorder 1, %s13
      %p185 = scmp.lt.s32.totalorder %s13, 3
      %p186 = pnand %p184, %p185
      %p187 = pneg %p186
      // Predicated region
      $region29: #{tpu_custom_call.1} parent=5 // pred_check
        _
      $region30: #{tpu_custom_call.1} parent=5 // pred_check_branch
        %189 = sbr.rel (%p186) target = $region32
      $region31: #{tpu_custom_call.1} parent=5 // pred_region
        %s190 = ssub.s32 %s13, 1
        // Predicated region
        $region33: #{tpu_custom_call.1} parent=31 // pred_check
          %p191 = pneg %p51
        $region34: #{tpu_custom_call.1} parent=31 // pred_check_branch
          %193 = sbr.rel (%p191) target = $region36
        $region35: #{tpu_custom_call.1} parent=31 // pred_region
          %194 = dma.done [#allocation3], 1024
        $region36: #{tpu_custom_call.1} parent=31 // pred_fallthru
          _
        %s195 = sand.u32 %s64, 1
        %s196 = scalar_lea.sflag [#allocation5], %s195
        %s197 = sand.u32 %s64, 1
        %s198 = smul.addr %s197, 64
        %s199 = scalar_lea.vmem [#allocation4], %s198
        // Predicated region
        $region37: #{tpu_custom_call.1} parent=31 // pred_check
          %p200 = pneg %p77
        $region38: #{tpu_custom_call.1} parent=31 // pred_check_branch
          %202 = sbr.rel (%p200) target = $region40
        $region39: #{tpu_custom_call.1} parent=31 // pred_region
          %203 = dma.done %s196, 1024
        $region40: #{tpu_custom_call.1} parent=31 // pred_fallthru
          _
        %p204 = pneg %p51
        %p205 = pneg %p48
        %s206 = sand.u32 %s64, 1
        %s207 = scalar_lea.sflag [#allocation5], %s206
        %s208 = sand.u32 %s64, 1
        %s209 = smul.addr %s208, 64
        %s210 = scalar_lea.vmem [#allocation4], %s209
        %p211 = pneg %p77
        %p212 = pneg %p74
        %p213 = pneg %p98
        %p214 = pneg %p95
        %p215 = pneg %p126
        %p216 = pneg %p123
        %s217 = sand.u32 %s113, 1
        %s218 = sand.u32 %s113, 1
        %s219 = smul.addr %s218, 128
        %s220 = scalar_lea.vmem [#allocation6], %s219
        %s221 = smul.u32 8, %s23
        %s222 = smul.u32 8, %s23
        %v223 = vld [vmem:[#allocation2] sm:$0xff]
        %v224 = vld [vmem:[#allocation2 + $0x8] sm:$0xff]
        %v225 = vld [vmem:[#allocation2 + $0x10] sm:$0xff]
        %v226 = vld [vmem:[#allocation2 + $0x18] sm:$0xff]
        %v227 = vld [vmem:[#allocation2 + $0x20] sm:$0xff]
        %v228 = vld [vmem:[#allocation2 + $0x28] sm:$0xff]
        %v229 = vld [vmem:[#allocation2 + $0x30] sm:$0xff]
        %v230 = vld [vmem:[#allocation2 + $0x38] sm:$0xff]
        %v231 = vld [vmem:[%s199] sm:$0xff]
        %v232 = vld [vmem:[%s199 + $0x8] sm:$0xff]
        %v233 = vld [vmem:[%s199 + $0x10] sm:$0xff]
        %v234 = vld [vmem:[%s199 + $0x18] sm:$0xff]
        %v235 = vld [vmem:[%s199 + $0x20] sm:$0xff]
        %v236 = vld [vmem:[%s199 + $0x28] sm:$0xff]
        %v237 = vld [vmem:[%s199 + $0x30] sm:$0xff]
        %v238 = vld [vmem:[%s199 + $0x38] sm:$0xff]
        %vm239 = vcmask 523264
        %v241 = vsel %vm239, %v223, 0
        %v244 = vsel %vm239, %v224, 0
        %v247 = vsel %vm239, %v225, 0
        %v250 = vsel %vm239, %v226, 0
        %v253 = vsel %vm239, %v227, 0
        %v256 = vsel %vm239, %v228, 0
        %v259 = vsel %vm239, %v229, 0
        %v262 = vsel %vm239, %v230, 0
        %264 = vmatprep.subr.mxu0 0.0
        %265 = vmatpush1.msra.mxu0 %v231
        %266 = vmatprep.subr.mxu0 0.0
        %267 = vmatpush1.msra.mxu0 %v232
        %268 = vmatprep.subr.mxu0 0.0
        %269 = vmatpush1.msra.mxu0 %v233
        %270 = vmatprep.subr.mxu0 0.0
        %271 = vmatpush1.msra.mxu0 %v234
        %272 = vmatprep.subr.mxu0 0.0
        %273 = vmatpush1.msra.mxu0 %v235
        %274 = vmatprep.subr.mxu0 0.0
        %275 = vmatpush1.msra.mxu0 %v236
        %276 = vmatprep.subr.mxu0 0.0
        %277 = vmatpush1.msra.mxu0 %v237
        %278 = vmatprep.subr.mxu0 0.0
        %279 = vmatpush1.msra.mxu0 %v238
        %280 = vmatprep.subr.mxu0 0.0
        %281 = vmatpush1.msra.mxu0 0.0
        %282 = vmatprep.subr.mxu0 0.0
        %283 = vmatpush1.msra.mxu0 0.0
        %284 = vmatprep.subr.mxu0 0.0
        %285 = vmatpush1.msra.mxu0 0.0
        %286 = vmatprep.subr.mxu0 0.0
        %287 = vmatpush1.msra.mxu0 0.0
        %288 = vmatprep.subr.mxu0 0.0
        %289 = vmatpush1.msra.mxu0 0.0
        %290 = vmatprep.subr.mxu0 0.0
        %291 = vmatpush1.msra.mxu0 0.0
        %292 = vmatprep.subr.mxu0 0.0
        %293 = vmatpush1.msra.mxu0 0.0
        %294 = vmatprep.subr.mxu0 0.0
        %295 = vmatpush1.msra.mxu0 0.0
        %296 = vmatprep.subr.mxu0 0.0
        %297 = vmatpush1.msra.mxu0 0.0
        %298 = vmatprep.subr.mxu0 0.0
        %299 = vmatpush1.msra.mxu0 0.0
        %300 = vmatprep.subr.mxu0 0.0
        %301 = vmatpush1.msra.mxu0 0.0
        %302 = vmatprep.subr.mxu0 0.0
        %303 = vmatpush1.msra.mxu0 0.0
        %304 = vmatprep.subr.mxu0 0.0
        %305 = vmatpush1.msra.mxu0 0.0
        %306 = vmatprep.subr.mxu0 0.0
        %307 = vmatpush1.msra.mxu0 0.0
        %308 = vmatprep.subr.mxu0 0.0
        %309 = vmatpush1.msra.mxu0 0.0
        %310 = vmatprep.subr.mxu0 0.0
        %311 = vmatpush1.msra.mxu0 0.0
        %312 = vmatprep.subr.mxu0 0.0
        %313 = vmatpush1.msra.mxu0 0.0
        %314 = vmatprep.subr.mxu0 0.0
        %315 = vmatpush1.msra.mxu0 0.0
        %316 = vmatprep.subr.mxu0 0.0
        %317 = vmatpush1.msra.mxu0 0.0
        %318 = vmatprep.subr.mxu0 0.0
        %319 = vmatpush1.msra.mxu0 0.0
        %320 = vmatprep.subr.mxu0 0.0
        %321 = vmatpush1.msra.mxu0 0.0
        %322 = vmatprep.subr.mxu0 0.0
        %323 = vmatpush1.msra.mxu0 0.0
        %324 = vmatprep.subr.mxu0 0.0
        %325 = vmatpush1.msra.mxu0 0.0
        %326 = vmatprep.subr.mxu0 0.0
        %327 = vmatpush1.msra.mxu0 0.0
        %328 = vmatprep.mubr.f32.mxu0 0.0
        %329 = vmatmul.mubr.f32.gmra.mrb[0].mxu0 %v241
        %v330 = vpop.f32.mrb[0].mxu0
        %v331 = vadd.f32 0.0, %v330
        %v332 = vpop.f32.mrb[0].mxu0
        %333 = vmatprep.mubr.f32.mxu0 0.0
        %334 = vmatmul.mubr.f32.gmra.mrb[0].mxu0 %v244
        %v335 = vpop.f32.mrb[0].mxu0
        %v336 = vadd.f32 0.0, %v335
        %v337 = vpop.f32.mrb[0].mxu0
        %338 = vmatprep.mubr.f32.mxu0 0.0
        %339 = vmatmul.mubr.f32.gmra.mrb[0].mxu0 %v247
        %v340 = vpop.f32.mrb[0].mxu0
        %v341 = vadd.f32 0.0, %v340
        %v342 = vpop.f32.mrb[0].mxu0
        %343 = vmatprep.mubr.f32.mxu0 0.0
        %344 = vmatmul.mubr.f32.gmra.mrb[0].mxu0 %v250
        %v345 = vpop.f32.mrb[0].mxu0
        %v346 = vadd.f32 0.0, %v345
        %v347 = vpop.f32.mrb[0].mxu0
        %348 = vmatprep.mubr.f32.mxu0 0.0
        %349 = vmatmul.mubr.f32.gmra.mrb[0].mxu0 %v253
        %v350 = vpop.f32.mrb[0].mxu0
        %v351 = vadd.f32 0.0, %v350
        %v352 = vpop.f32.mrb[0].mxu0
        %353 = vmatprep.mubr.f32.mxu0 0.0
        %354 = vmatmul.mubr.f32.gmra.mrb[0].mxu0 %v256
        %v355 = vpop.f32.mrb[0].mxu0
        %v356 = vadd.f32 0.0, %v355
        %v357 = vpop.f32.mrb[0].mxu0
        %358 = vmatprep.mubr.f32.mxu0 0.0
        %359 = vmatmul.mubr.f32.gmra.mrb[0].mxu0 %v259
        %v360 = vpop.f32.mrb[0].mxu0
        %v361 = vadd.f32 0.0, %v360
        %v362 = vpop.f32.mrb[0].mxu0
        %363 = vmatprep.mubr.f32.mxu0 0.0
        %364 = vmatmul.mubr.f32.gmra.mrb[0].mxu0 %v262
        %v365 = vpop.f32.mrb[0].mxu0
        %v366 = vadd.f32 0.0, %v365
        %v367 = vpop.f32.mrb[0].mxu0
        %368 = vdwg.mxu0
        %v369 = vld [vmem:[%s2] sm:$0xff]
        %v370 = vld [vmem:[%s2 + $0x8] sm:$0xf]
        %vm371 = vcmask 64512
        %v373 = vsel %vm371, %v369, 0
        %v376 = vsel %vm371, %v370, 0
        %378 = vmatprep.subr.mxu0 0.0
        %379 = vmatpush1.msra.mxu0 %v331
        %380 = vmatprep.subr.mxu0 0.0
        %381 = vmatpush1.msra.mxu0 0.0
        %382 = vmatprep.subr.mxu0 0.0
        %383 = vmatpush1.msra.mxu0 0.0
        %384 = vmatprep.subr.mxu0 0.0
        %385 = vmatpush1.msra.mxu0 0.0
        %386 = vmatprep.subr.mxu0 0.0
        %387 = vmatpush1.msra.mxu0 0.0
        %388 = vmatprep.subr.mxu0 0.0
        %389 = vmatpush1.msra.mxu0 0.0
        %390 = vmatprep.subr.mxu0 0.0
        %391 = vmatpush1.msra.mxu0 0.0
        %392 = vmatprep.subr.mxu0 0.0
        %393 = vmatpush1.msra.mxu0 0.0
        %394 = vmatprep.subr.mxu0 0.0
        %395 = vmatpush1.msra.mxu0 0.0
        %396 = vmatprep.subr.mxu0 0.0
        %397 = vmatpush1.msra.mxu0 0.0
        %398 = vmatprep.subr.mxu0 0.0
        %399 = vmatpush1.msra.mxu0 0.0
        %400 = vmatprep.subr.mxu0 0.0
        %401 = vmatpush1.msra.mxu0 0.0
        %402 = vmatprep.subr.mxu0 0.0
        %403 = vmatpush1.msra.mxu0 0.0
        %404 = vmatprep.subr.mxu0 0.0
        %405 = vmatpush1.msra.mxu0 0.0
        %406 = vmatprep.subr.mxu0 0.0
        %407 = vmatpush1.msra.mxu0 0.0
        %408 = vmatprep.subr.mxu0 0.0
        %409 = vmatpush1.msra.mxu0 0.0
        %410 = vmatprep.subr.mxu0 0.0
        %411 = vmatpush1.msra.mxu0 0.0
        %412 = vmatprep.subr.mxu0 0.0
        %413 = vmatpush1.msra.mxu0 0.0
        %414 = vmatprep.subr.mxu0 0.0
        %415 = vmatpush1.msra.mxu0 0.0
        %416 = vmatprep.subr.mxu0 0.0
        %417 = vmatpush1.msra.mxu0 0.0
        %418 = vmatprep.subr.mxu0 0.0
        %419 = vmatpush1.msra.mxu0 0.0
        %420 = vmatprep.subr.mxu0 0.0
        %421 = vmatpush1.msra.mxu0 0.0
        %422 = vmatprep.subr.mxu0 0.0
        %423 = vmatpush1.msra.mxu0 0.0
        %424 = vmatprep.subr.mxu0 0.0
        %425 = vmatpush1.msra.mxu0 0.0
        %426 = vmatprep.subr.mxu0 0.0
        %427 = vmatpush1.msra.mxu0 0.0
        %428 = vmatprep.subr.mxu0 0.0
        %429 = vmatpush1.msra.mxu0 0.0
        %430 = vmatprep.subr.mxu0 0.0
        %431 = vmatpush1.msra.mxu0 0.0
        %432 = vmatprep.subr.mxu0 0.0
        %433 = vmatpush1.msra.mxu0 0.0
        %434 = vmatprep.subr.mxu0 0.0
        %435 = vmatpush1.msra.mxu0 0.0
        %436 = vmatprep.subr.mxu0 0.0
        %437 = vmatpush1.msra.mxu0 0.0
        %438 = vmatprep.subr.mxu0 0.0
        %439 = vmatpush1.msra.mxu0 0.0
        %440 = vmatprep.subr.mxu0 0.0
        %441 = vmatpush1.msra.mxu0 0.0
        %442 = vmatprep.mubr.f32.mxu0 0.0
        %443 = vmatmul.mubr.f32.gmra.mrb[0].mxu0 %v373
        %v444 = vpop.f32.mrb[0].mxu0
        %v445 = vadd.f32 0.0, %v444
        %v446 = vpop.f32.mrb[0].mxu0
        %447 = vmatprep.mubr.f32.mxu0 0.0
        %448 = vmatmul.mubr.f32.gmra.mrb[0].mxu0 %v376
        %v449 = vpop.f32.mrb[0].mxu0
        %v450 = vadd.f32 0.0, %v449
        %v451 = vpop.f32.mrb[0].mxu0
        %452 = vdwg.mxu0
        %453 = vst [vmem:[%s220] sm:$0xff] %v445
        %454 = vst [vmem:[%s220 + $0x8] sm:$0xf] %v450
        %455 = vmatprep.subr.mxu0 0.0
        %456 = vmatpush1.msra.mxu0 %v336
        %457 = vmatprep.subr.mxu0 0.0
        %458 = vmatpush1.msra.mxu0 0.0
        %459 = vmatprep.subr.mxu0 0.0
        %460 = vmatpush1.msra.mxu0 0.0
        %461 = vmatprep.subr.mxu0 0.0
        %462 = vmatpush1.msra.mxu0 0.0
        %463 = vmatprep.subr.mxu0 0.0
        %464 = vmatpush1.msra.mxu0 0.0
        %465 = vmatprep.subr.mxu0 0.0
        %466 = vmatpush1.msra.mxu0 0.0
        %467 = vmatprep.subr.mxu0 0.0
        %468 = vmatpush1.msra.mxu0 0.0
        %469 = vmatprep.subr.mxu0 0.0
        %470 = vmatpush1.msra.mxu0 0.0
        %471 = vmatprep.subr.mxu0 0.0
        %472 = vmatpush1.msra.mxu0 0.0
        %473 = vmatprep.subr.mxu0 0.0
        %474 = vmatpush1.msra.mxu0 0.0
        %475 = vmatprep.subr.mxu0 0.0
        %476 = vmatpush1.msra.mxu0 0.0
        %477 = vmatprep.subr.mxu0 0.0
        %478 = vmatpush1.msra.mxu0 0.0
        %479 = vmatprep.subr.mxu0 0.0
        %480 = vmatpush1.msra.mxu0 0.0
        %481 = vmatprep.subr.mxu0 0.0
        %482 = vmatpush1.msra.mxu0 0.0
        %483 = vmatprep.subr.mxu0 0.0
        %484 = vmatpush1.msra.mxu0 0.0
        %485 = vmatprep.subr.mxu0 0.0
        %486 = vmatpush1.msra.mxu0 0.0
        %487 = vmatprep.subr.mxu0 0.0
        %488 = vmatpush1.msra.mxu0 0.0
        %489 = vmatprep.subr.mxu0 0.0
        %490 = vmatpush1.msra.mxu0 0.0
        %491 = vmatprep.subr.mxu0 0.0
        %492 = vmatpush1.msra.mxu0 0.0
        %493 = vmatprep.subr.mxu0 0.0
        %494 = vmatpush1.msra.mxu0 0.0
        %495 = vmatprep.subr.mxu0 0.0
        %496 = vmatpush1.msra.mxu0 0.0
        %497 = vmatprep.subr.mxu0 0.0
        %498 = vmatpush1.msra.mxu0 0.0
        %499 = vmatprep.subr.mxu0 0.0
        %500 = vmatpush1.msra.mxu0 0.0
        %501 = vmatprep.subr.mxu0 0.0
        %502 = vmatpush1.msra.mxu0 0.0
        %503 = vmatprep.subr.mxu0 0.0
        %504 = vmatpush1.msra.mxu0 0.0
        %505 = vmatprep.subr.mxu0 0.0
        %506 = vmatpush1.msra.mxu0 0.0
        %507 = vmatprep.subr.mxu0 0.0
        %508 = vmatpush1.msra.mxu0 0.0
        %509 = vmatprep.subr.mxu0 0.0
        %510 = vmatpush1.msra.mxu0 0.0
        %511 = vmatprep.subr.mxu0 0.0
        %512 = vmatpush1.msra.mxu0 0.0
        %513 = vmatprep.subr.mxu0 0.0
        %514 = vmatpush1.msra.mxu0 0.0
        %515 = vmatprep.subr.mxu0 0.0
        %516 = vmatpush1.msra.mxu0 0.0
        %517 = vmatprep.subr.mxu0 0.0
        %518 = vmatpush1.msra.mxu0 0.0
        %519 = vmatprep.mubr.f32.mxu0 0.0
        %520 = vmatmul.mubr.f32.gmra.mrb[0].mxu0 %v373
        %v521 = vpop.f32.mrb[0].mxu0
        %v522 = vadd.f32 0.0, %v521
        %v523 = vpop.f32.mrb[0].mxu0
        %524 = vmatprep.mubr.f32.mxu0 0.0
        %525 = vmatmul.mubr.f32.gmra.mrb[0].mxu0 %v376
        %v526 = vpop.f32.mrb[0].mxu0
        %v527 = vadd.f32 0.0, %v526
        %v528 = vpop.f32.mrb[0].mxu0
        %529 = vdwg.mxu0
        %s530 = scalar_lea.vmem %s220, 16 [#allocation6]
        %531 = vst [vmem:[%s530] sm:$0xff] %v522
        %532 = vst [vmem:[%s530 + $0x8] sm:$0xf] %v527
        %533 = vmatprep.subr.mxu0 0.0
        %534 = vmatpush1.msra.mxu0 %v341
        %535 = vmatprep.subr.mxu0 0.0
        %536 = vmatpush1.msra.mxu0 0.0
        %537 = vmatprep.subr.mxu0 0.0
        %538 = vmatpush1.msra.mxu0 0.0
        %539 = vmatprep.subr.mxu0 0.0
        %540 = vmatpush1.msra.mxu0 0.0
        %541 = vmatprep.subr.mxu0 0.0
        %542 = vmatpush1.msra.mxu0 0.0
        %543 = vmatprep.subr.mxu0 0.0
        %544 = vmatpush1.msra.mxu0 0.0
        %545 = vmatprep.subr.mxu0 0.0
        %546 = vmatpush1.msra.mxu0 0.0
        %547 = vmatprep.subr.mxu0 0.0
        %548 = vmatpush1.msra.mxu0 0.0
        %549 = vmatprep.subr.mxu0 0.0
        %550 = vmatpush1.msra.mxu0 0.0
        %551 = vmatprep.subr.mxu0 0.0
        %552 = vmatpush1.msra.mxu0 0.0
        %553 = vmatprep.subr.mxu0 0.0
        %554 = vmatpush1.msra.mxu0 0.0
        %555 = vmatprep.subr.mxu0 0.0
        %556 = vmatpush1.msra.mxu0 0.0
        %557 = vmatprep.subr.mxu0 0.0
        %558 = vmatpush1.msra.mxu0 0.0
        %559 = vmatprep.subr.mxu0 0.0
        %560 = vmatpush1.msra.mxu0 0.0
        %561 = vmatprep.subr.mxu0 0.0
        %562 = vmatpush1.msra.mxu0 0.0
        %563 = vmatprep.subr.mxu0 0.0
        %564 = vmatpush1.msra.mxu0 0.0
        %565 = vmatprep.subr.mxu0 0.0
        %566 = vmatpush1.msra.mxu0 0.0
        %567 = vmatprep.subr.mxu0 0.0
        %568 = vmatpush1.msra.mxu0 0.0
        %569 = vmatprep.subr.mxu0 0.0
        %570 = vmatpush1.msra.mxu0 0.0
        %571 = vmatprep.subr.mxu0 0.0
        %572 = vmatpush1.msra.mxu0 0.0
        %573 = vmatprep.subr.mxu0 0.0
        %574 = vmatpush1.msra.mxu0 0.0
        %575 = vmatprep.subr.mxu0 0.0
        %576 = vmatpush1.msra.mxu0 0.0
        %577 = vmatprep.subr.mxu0 0.0
        %578 = vmatpush1.msra.mxu0 0.0
        %579 = vmatprep.subr.mxu0 0.0
        %580 = vmatpush1.msra.mxu0 0.0
        %581 = vmatprep.subr.mxu0 0.0
        %582 = vmatpush1.msra.mxu0 0.0
        %583 = vmatprep.subr.mxu0 0.0
        %584 = vmatpush1.msra.mxu0 0.0
        %585 = vmatprep.subr.mxu0 0.0
        %586 = vmatpush1.msra.mxu0 0.0
        %587 = vmatprep.subr.mxu0 0.0
        %588 = vmatpush1.msra.mxu0 0.0
        %589 = vmatprep.subr.mxu0 0.0
        %590 = vmatpush1.msra.mxu0 0.0
        %591 = vmatprep.subr.mxu0 0.0
        %592 = vmatpush1.msra.mxu0 0.0
        %593 = vmatprep.subr.mxu0 0.0
        %594 = vmatpush1.msra.mxu0 0.0
        %595 = vmatprep.subr.mxu0 0.0
        %596 = vmatpush1.msra.mxu0 0.0
        %597 = vmatprep.mubr.f32.mxu0 0.0
        %598 = vmatmul.mubr.f32.gmra.mrb[0].mxu0 %v373
        %v599 = vpop.f32.mrb[0].mxu0
        %v600 = vadd.f32 0.0, %v599
        %v601 = vpop.f32.mrb[0].mxu0
        %602 = vmatprep.mubr.f32.mxu0 0.0
        %603 = vmatmul.mubr.f32.gmra.mrb[0].mxu0 %v376
        %v604 = vpop.f32.mrb[0].mxu0
        %v605 = vadd.f32 0.0, %v604
        %v606 = vpop.f32.mrb[0].mxu0
        %607 = vdwg.mxu0
        %s608 = scalar_lea.vmem %s220, 32 [#allocation6]
        %609 = vst [vmem:[%s608] sm:$0xff] %v600
        %610 = vst [vmem:[%s608 + $0x8] sm:$0xf] %v605
        %611 = vmatprep.subr.mxu0 0.0
        %612 = vmatpush1.msra.mxu0 %v346
        %613 = vmatprep.subr.mxu0 0.0
        %614 = vmatpush1.msra.mxu0 0.0
        %615 = vmatprep.subr.mxu0 0.0
        %616 = vmatpush1.msra.mxu0 0.0
        %617 = vmatprep.subr.mxu0 0.0
        %618 = vmatpush1.msra.mxu0 0.0
        %619 = vmatprep.subr.mxu0 0.0
        %620 = vmatpush1.msra.mxu0 0.0
        %621 = vmatprep.subr.mxu0 0.0
        %622 = vmatpush1.msra.mxu0 0.0
        %623 = vmatprep.subr.mxu0 0.0
        %624 = vmatpush1.msra.mxu0 0.0
        %625 = vmatprep.subr.mxu0 0.0
        %626 = vmatpush1.msra.mxu0 0.0
        %627 = vmatprep.subr.mxu0 0.0
        %628 = vmatpush1.msra.mxu0 0.0
        %629 = vmatprep.subr.mxu0 0.0
        %630 = vmatpush1.msra.mxu0 0.0
        %631 = vmatprep.subr.mxu0 0.0
        %632 = vmatpush1.msra.mxu0 0.0
        %633 = vmatprep.subr.mxu0 0.0
        %634 = vmatpush1.msra.mxu0 0.0
        %635 = vmatprep.subr.mxu0 0.0
        %636 = vmatpush1.msra.mxu0 0.0
        %637 = vmatprep.subr.mxu0 0.0
        %638 = vmatpush1.msra.mxu0 0.0
        %639 = vmatprep.subr.mxu0 0.0
        %640 = vmatpush1.msra.mxu0 0.0
        %641 = vmatprep.subr.mxu0 0.0
        %642 = vmatpush1.msra.mxu0 0.0
        %643 = vmatprep.subr.mxu0 0.0
        %644 = vmatpush1.msra.mxu0 0.0
        %645 = vmatprep.subr.mxu0 0.0
        %646 = vmatpush1.msra.mxu0 0.0
        %647 = vmatprep.subr.mxu0 0.0
        %648 = vmatpush1.msra.mxu0 0.0
        %649 = vmatprep.subr.mxu0 0.0
        %650 = vmatpush1.msra.mxu0 0.0
        %651 = vmatprep.subr.mxu0 0.0
        %652 = vmatpush1.msra.mxu0 0.0
        %653 = vmatprep.subr.mxu0 0.0
        %654 = vmatpush1.msra.mxu0 0.0
        %655 = vmatprep.subr.mxu0 0.0
        %656 = vmatpush1.msra.mxu0 0.0
        %657 = vmatprep.subr.mxu0 0.0
        %658 = vmatpush1.msra.mxu0 0.0
        %659 = vmatprep.subr.mxu0 0.0
        %660 = vmatpush1.msra.mxu0 0.0
        %661 = vmatprep.subr.mxu0 0.0
        %662 = vmatpush1.msra.mxu0 0.0
        %663 = vmatprep.subr.mxu0 0.0
        %664 = vmatpush1.msra.mxu0 0.0
        %665 = vmatprep.subr.mxu0 0.0
        %666 = vmatpush1.msra.mxu0 0.0
        %667 = vmatprep.subr.mxu0 0.0
        %668 = vmatpush1.msra.mxu0 0.0
        %669 = vmatprep.subr.mxu0 0.0
        %670 = vmatpush1.msra.mxu0 0.0
        %671 = vmatprep.subr.mxu0 0.0
        %672 = vmatpush1.msra.mxu0 0.0
        %673 = vmatprep.subr.mxu0 0.0
        %674 = vmatpush1.msra.mxu0 0.0
        %675 = vmatprep.mubr.f32.mxu0 0.0
        %676 = vmatmul.mubr.f32.gmra.mrb[0].mxu0 %v373
        %v677 = vpop.f32.mrb[0].mxu0
        %v678 = vadd.f32 0.0, %v677
        %v679 = vpop.f32.mrb[0].mxu0
        %680 = vmatprep.mubr.f32.mxu0 0.0
        %681 = vmatmul.mubr.f32.gmra.mrb[0].mxu0 %v376
        %v682 = vpop.f32.mrb[0].mxu0
        %v683 = vadd.f32 0.0, %v682
        %v684 = vpop.f32.mrb[0].mxu0
        %685 = vdwg.mxu0
        %s686 = scalar_lea.vmem %s220, 48 [#allocation6]
        %687 = vst [vmem:[%s686] sm:$0xff] %v678
        %688 = vst [vmem:[%s686 + $0x8] sm:$0xf] %v683
        %689 = vmatprep.subr.mxu0 0.0
        %690 = vmatpush1.msra.mxu0 %v351
        %691 = vmatprep.subr.mxu0 0.0
        %692 = vmatpush1.msra.mxu0 0.0
        %693 = vmatprep.subr.mxu0 0.0
        %694 = vmatpush1.msra.mxu0 0.0
        %695 = vmatprep.subr.mxu0 0.0
        %696 = vmatpush1.msra.mxu0 0.0
        %697 = vmatprep.subr.mxu0 0.0
        %698 = vmatpush1.msra.mxu0 0.0
        %699 = vmatprep.subr.mxu0 0.0
        %700 = vmatpush1.msra.mxu0 0.0
        %701 = vmatprep.subr.mxu0 0.0
        %702 = vmatpush1.msra.mxu0 0.0
        %703 = vmatprep.subr.mxu0 0.0
        %704 = vmatpush1.msra.mxu0 0.0
        %705 = vmatprep.subr.mxu0 0.0
        %706 = vmatpush1.msra.mxu0 0.0
        %707 = vmatprep.subr.mxu0 0.0
        %708 = vmatpush1.msra.mxu0 0.0
        %709 = vmatprep.subr.mxu0 0.0
        %710 = vmatpush1.msra.mxu0 0.0
        %711 = vmatprep.subr.mxu0 0.0
        %712 = vmatpush1.msra.mxu0 0.0
        %713 = vmatprep.subr.mxu0 0.0
        %714 = vmatpush1.msra.mxu0 0.0
        %715 = vmatprep.subr.mxu0 0.0
        %716 = vmatpush1.msra.mxu0 0.0
        %717 = vmatprep.subr.mxu0 0.0
        %718 = vmatpush1.msra.mxu0 0.0
        %719 = vmatprep.subr.mxu0 0.0
        %720 = vmatpush1.msra.mxu0 0.0
        %721 = vmatprep.subr.mxu0 0.0
        %722 = vmatpush1.msra.mxu0 0.0
        %723 = vmatprep.subr.mxu0 0.0
        %724 = vmatpush1.msra.mxu0 0.0
        %725 = vmatprep.subr.mxu0 0.0
        %726 = vmatpush1.msra.mxu0 0.0
        %727 = vmatprep.subr.mxu0 0.0
        %728 = vmatpush1.msra.mxu0 0.0
        %729 = vmatprep.subr.mxu0 0.0
        %730 = vmatpush1.msra.mxu0 0.0
        %731 = vmatprep.subr.mxu0 0.0
        %732 = vmatpush1.msra.mxu0 0.0
        %733 = vmatprep.subr.mxu0 0.0
        %734 = vmatpush1.msra.mxu0 0.0
        %735 = vmatprep.subr.mxu0 0.0
        %736 = vmatpush1.msra.mxu0 0.0
        %737 = vmatprep.subr.mxu0 0.0
        %738 = vmatpush1.msra.mxu0 0.0
        %739 = vmatprep.subr.mxu0 0.0
        %740 = vmatpush1.msra.mxu0 0.0
        %741 = vmatprep.subr.mxu0 0.0
        %742 = vmatpush1.msra.mxu0 0.0
        %743 = vmatprep.subr.mxu0 0.0
        %744 = vmatpush1.msra.mxu0 0.0
        %745 = vmatprep.subr.mxu0 0.0
        %746 = vmatpush1.msra.mxu0 0.0
        %747 = vmatprep.subr.mxu0 0.0
        %748 = vmatpush1.msra.mxu0 0.0
        %749 = vmatprep.subr.mxu0 0.0
        %750 = vmatpush1.msra.mxu0 0.0
        %751 = vmatprep.subr.mxu0 0.0
        %752 = vmatpush1.msra.mxu0 0.0
        %753 = vmatprep.mubr.f32.mxu0 0.0
        %754 = vmatmul.mubr.f32.gmra.mrb[0].mxu0 %v373
        %v755 = vpop.f32.mrb[0].mxu0
        %v756 = vadd.f32 0.0, %v755
        %v757 = vpop.f32.mrb[0].mxu0
        %758 = vmatprep.mubr.f32.mxu0 0.0
        %759 = vmatmul.mubr.f32.gmra.mrb[0].mxu0 %v376
        %v760 = vpop.f32.mrb[0].mxu0
        %v761 = vadd.f32 0.0, %v760
        %v762 = vpop.f32.mrb[0].mxu0
        %763 = vdwg.mxu0
        %s764 = scalar_lea.vmem %s220, 64 [#allocation6]
        %765 = vst [vmem:[%s764] sm:$0xff] %v756
        %766 = vst [vmem:[%s764 + $0x8] sm:$0xf] %v761
        %767 = vmatprep.subr.mxu0 0.0
        %768 = vmatpush1.msra.mxu0 %v356
        %769 = vmatprep.subr.mxu0 0.0
        %770 = vmatpush1.msra.mxu0 0.0
        %771 = vmatprep.subr.mxu0 0.0
        %772 = vmatpush1.msra.mxu0 0.0
        %773 = vmatprep.subr.mxu0 0.0
        %774 = vmatpush1.msra.mxu0 0.0
        %775 = vmatprep.subr.mxu0 0.0
        %776 = vmatpush1.msra.mxu0 0.0
        %777 = vmatprep.subr.mxu0 0.0
        %778 = vmatpush1.msra.mxu0 0.0
        %779 = vmatprep.subr.mxu0 0.0
        %780 = vmatpush1.msra.mxu0 0.0
        %781 = vmatprep.subr.mxu0 0.0
        %782 = vmatpush1.msra.mxu0 0.0
        %783 = vmatprep.subr.mxu0 0.0
        %784 = vmatpush1.msra.mxu0 0.0
        %785 = vmatprep.subr.mxu0 0.0
        %786 = vmatpush1.msra.mxu0 0.0
        %787 = vmatprep.subr.mxu0 0.0
        %788 = vmatpush1.msra.mxu0 0.0
        %789 = vmatprep.subr.mxu0 0.0
        %790 = vmatpush1.msra.mxu0 0.0
        %791 = vmatprep.subr.mxu0 0.0
        %792 = vmatpush1.msra.mxu0 0.0
        %793 = vmatprep.subr.mxu0 0.0
        %794 = vmatpush1.msra.mxu0 0.0
        %795 = vmatprep.subr.mxu0 0.0
        %796 = vmatpush1.msra.mxu0 0.0
        %797 = vmatprep.subr.mxu0 0.0
        %798 = vmatpush1.msra.mxu0 0.0
        %799 = vmatprep.subr.mxu0 0.0
        %800 = vmatpush1.msra.mxu0 0.0
        %801 = vmatprep.subr.mxu0 0.0
        %802 = vmatpush1.msra.mxu0 0.0
        %803 = vmatprep.subr.mxu0 0.0
        %804 = vmatpush1.msra.mxu0 0.0
        %805 = vmatprep.subr.mxu0 0.0
        %806 = vmatpush1.msra.mxu0 0.0
        %807 = vmatprep.subr.mxu0 0.0
        %808 = vmatpush1.msra.mxu0 0.0
        %809 = vmatprep.subr.mxu0 0.0
        %810 = vmatpush1.msra.mxu0 0.0
        %811 = vmatprep.subr.mxu0 0.0
        %812 = vmatpush1.msra.mxu0 0.0
        %813 = vmatprep.subr.mxu0 0.0
        %814 = vmatpush1.msra.mxu0 0.0
        %815 = vmatprep.subr.mxu0 0.0
        %816 = vmatpush1.msra.mxu0 0.0
        %817 = vmatprep.subr.mxu0 0.0
        %818 = vmatpush1.msra.mxu0 0.0
        %819 = vmatprep.subr.mxu0 0.0
        %820 = vmatpush1.msra.mxu0 0.0
        %821 = vmatprep.subr.mxu0 0.0
        %822 = vmatpush1.msra.mxu0 0.0
        %823 = vmatprep.subr.mxu0 0.0
        %824 = vmatpush1.msra.mxu0 0.0
        %825 = vmatprep.subr.mxu0 0.0
        %826 = vmatpush1.msra.mxu0 0.0
        %827 = vmatprep.subr.mxu0 0.0
        %828 = vmatpush1.msra.mxu0 0.0
        %829 = vmatprep.subr.mxu0 0.0
        %830 = vmatpush1.msra.mxu0 0.0
        %831 = vmatprep.mubr.f32.mxu0 0.0
        %832 = vmatmul.mubr.f32.gmra.mrb[0].mxu0 %v373
        %v833 = vpop.f32.mrb[0].mxu0
        %v834 = vadd.f32 0.0, %v833
        %v835 = vpop.f32.mrb[0].mxu0
        %836 = vmatprep.mubr.f32.mxu0 0.0
        %837 = vmatmul.mubr.f32.gmra.mrb[0].mxu0 %v376
        %v838 = vpop.f32.mrb[0].mxu0
        %v839 = vadd.f32 0.0, %v838
        %v840 = vpop.f32.mrb[0].mxu0
        %841 = vdwg.mxu0
        %s842 = scalar_lea.vmem %s220, 80 [#allocation6]
        %843 = vst [vmem:[%s842] sm:$0xff] %v834
        %844 = vst [vmem:[%s842 + $0x8] sm:$0xf] %v839
        %845 = vmatprep.subr.mxu0 0.0
        %846 = vmatpush1.msra.mxu0 %v361
        %847 = vmatprep.subr.mxu0 0.0
        %848 = vmatpush1.msra.mxu0 0.0
        %849 = vmatprep.subr.mxu0 0.0
        %850 = vmatpush1.msra.mxu0 0.0
        %851 = vmatprep.subr.mxu0 0.0
        %852 = vmatpush1.msra.mxu0 0.0
        %853 = vmatprep.subr.mxu0 0.0
        %854 = vmatpush1.msra.mxu0 0.0
        %855 = vmatprep.subr.mxu0 0.0
        %856 = vmatpush1.msra.mxu0 0.0
        %857 = vmatprep.subr.mxu0 0.0
        %858 = vmatpush1.msra.mxu0 0.0
        %859 = vmatprep.subr.mxu0 0.0
        %860 = vmatpush1.msra.mxu0 0.0
        %861 = vmatprep.subr.mxu0 0.0
        %862 = vmatpush1.msra.mxu0 0.0
        %863 = vmatprep.subr.mxu0 0.0
        %864 = vmatpush1.msra.mxu0 0.0
        %865 = vmatprep.subr.mxu0 0.0
        %866 = vmatpush1.msra.mxu0 0.0
        %867 = vmatprep.subr.mxu0 0.0
        %868 = vmatpush1.msra.mxu0 0.0
        %869 = vmatprep.subr.mxu0 0.0
        %870 = vmatpush1.msra.mxu0 0.0
        %871 = vmatprep.subr.mxu0 0.0
        %872 = vmatpush1.msra.mxu0 0.0
        %873 = vmatprep.subr.mxu0 0.0
        %874 = vmatpush1.msra.mxu0 0.0
        %875 = vmatprep.subr.mxu0 0.0
        %876 = vmatpush1.msra.mxu0 0.0
        %877 = vmatprep.subr.mxu0 0.0
        %878 = vmatpush1.msra.mxu0 0.0
        %879 = vmatprep.subr.mxu0 0.0
        %880 = vmatpush1.msra.mxu0 0.0
        %881 = vmatprep.subr.mxu0 0.0
        %882 = vmatpush1.msra.mxu0 0.0
        %883 = vmatprep.subr.mxu0 0.0
        %884 = vmatpush1.msra.mxu0 0.0
        %885 = vmatprep.subr.mxu0 0.0
        %886 = vmatpush1.msra.mxu0 0.0
        %887 = vmatprep.subr.mxu0 0.0
        %888 = vmatpush1.msra.mxu0 0.0
        %889 = vmatprep.subr.mxu0 0.0
        %890 = vmatpush1.msra.mxu0 0.0
        %891 = vmatprep.subr.mxu0 0.0
        %892 = vmatpush1.msra.mxu0 0.0
        %893 = vmatprep.subr.mxu0 0.0
        %894 = vmatpush1.msra.mxu0 0.0
        %895 = vmatprep.subr.mxu0 0.0
        %896 = vmatpush1.msra.mxu0 0.0
        %897 = vmatprep.subr.mxu0 0.0
        %898 = vmatpush1.msra.mxu0 0.0
        %899 = vmatprep.subr.mxu0 0.0
        %900 = vmatpush1.msra.mxu0 0.0
        %901 = vmatprep.subr.mxu0 0.0
        %902 = vmatpush1.msra.mxu0 0.0
        %903 = vmatprep.subr.mxu0 0.0
        %904 = vmatpush1.msra.mxu0 0.0
        %905 = vmatprep.subr.mxu0 0.0
        %906 = vmatpush1.msra.mxu0 0.0
        %907 = vmatprep.subr.mxu0 0.0
        %908 = vmatpush1.msra.mxu0 0.0
        %909 = vmatprep.mubr.f32.mxu0 0.0
        %910 = vmatmul.mubr.f32.gmra.mrb[0].mxu0 %v373
        %v911 = vpop.f32.mrb[0].mxu0
        %v912 = vadd.f32 0.0, %v911
        %v913 = vpop.f32.mrb[0].mxu0
        %914 = vmatprep.mubr.f32.mxu0 0.0
        %915 = vmatmul.mubr.f32.gmra.mrb[0].mxu0 %v376
        %v916 = vpop.f32.mrb[0].mxu0
        %v917 = vadd.f32 0.0, %v916
        %v918 = vpop.f32.mrb[0].mxu0
        %919 = vdwg.mxu0
        %s920 = scalar_lea.vmem %s220, 96 [#allocation6]
        %921 = vst [vmem:[%s920] sm:$0xff] %v912
        %922 = vst [vmem:[%s920 + $0x8] sm:$0xf] %v917
        %923 = vmatprep.subr.mxu0 0.0
        %924 = vmatpush1.msra.mxu0 %v366
        %925 = vmatprep.subr.mxu0 0.0
        %926 = vmatpush1.msra.mxu0 0.0
        %927 = vmatprep.subr.mxu0 0.0
        %928 = vmatpush1.msra.mxu0 0.0
        %929 = vmatprep.subr.mxu0 0.0
        %930 = vmatpush1.msra.mxu0 0.0
        %931 = vmatprep.subr.mxu0 0.0
        %932 = vmatpush1.msra.mxu0 0.0
        %933 = vmatprep.subr.mxu0 0.0
        %934 = vmatpush1.msra.mxu0 0.0
        %935 = vmatprep.subr.mxu0 0.0
        %936 = vmatpush1.msra.mxu0 0.0
        %937 = vmatprep.subr.mxu0 0.0
        %938 = vmatpush1.msra.mxu0 0.0
        %939 = vmatprep.subr.mxu0 0.0
        %940 = vmatpush1.msra.mxu0 0.0
        %941 = vmatprep.subr.mxu0 0.0
        %942 = vmatpush1.msra.mxu0 0.0
        %943 = vmatprep.subr.mxu0 0.0
        %944 = vmatpush1.msra.mxu0 0.0
        %945 = vmatprep.subr.mxu0 0.0
        %946 = vmatpush1.msra.mxu0 0.0
        %947 = vmatprep.subr.mxu0 0.0
        %948 = vmatpush1.msra.mxu0 0.0
        %949 = vmatprep.subr.mxu0 0.0
        %950 = vmatpush1.msra.mxu0 0.0
        %951 = vmatprep.subr.mxu0 0.0
        %952 = vmatpush1.msra.mxu0 0.0
        %953 = vmatprep.subr.mxu0 0.0
        %954 = vmatpush1.msra.mxu0 0.0
        %955 = vmatprep.subr.mxu0 0.0
        %956 = vmatpush1.msra.mxu0 0.0
        %957 = vmatprep.subr.mxu0 0.0
        %958 = vmatpush1.msra.mxu0 0.0
        %959 = vmatprep.subr.mxu0 0.0
        %960 = vmatpush1.msra.mxu0 0.0
        %961 = vmatprep.subr.mxu0 0.0
        %962 = vmatpush1.msra.mxu0 0.0
        %963 = vmatprep.subr.mxu0 0.0
        %964 = vmatpush1.msra.mxu0 0.0
        %965 = vmatprep.subr.mxu0 0.0
        %966 = vmatpush1.msra.mxu0 0.0
        %967 = vmatprep.subr.mxu0 0.0
        %968 = vmatpush1.msra.mxu0 0.0
        %969 = vmatprep.subr.mxu0 0.0
        %970 = vmatpush1.msra.mxu0 0.0
        %971 = vmatprep.subr.mxu0 0.0
        %972 = vmatpush1.msra.mxu0 0.0
        %973 = vmatprep.subr.mxu0 0.0
        %974 = vmatpush1.msra.mxu0 0.0
        %975 = vmatprep.subr.mxu0 0.0
        %976 = vmatpush1.msra.mxu0 0.0
        %977 = vmatprep.subr.mxu0 0.0
        %978 = vmatpush1.msra.mxu0 0.0
        %979 = vmatprep.subr.mxu0 0.0
        %980 = vmatpush1.msra.mxu0 0.0
        %981 = vmatprep.subr.mxu0 0.0
        %982 = vmatpush1.msra.mxu0 0.0
        %983 = vmatprep.subr.mxu0 0.0
        %984 = vmatpush1.msra.mxu0 0.0
        %985 = vmatprep.subr.mxu0 0.0
        %986 = vmatpush1.msra.mxu0 0.0
        %987 = vmatprep.mubr.f32.mxu0 0.0
        %988 = vmatmul.mubr.f32.gmra.mrb[0].mxu0 %v373
        %v989 = vpop.f32.mrb[0].mxu0
        %v990 = vadd.f32 0.0, %v989
        %v991 = vpop.f32.mrb[0].mxu0
        %992 = vmatprep.mubr.f32.mxu0 0.0
        %993 = vmatmul.mubr.f32.gmra.mrb[0].mxu0 %v376
        %v994 = vpop.f32.mrb[0].mxu0
        %v995 = vadd.f32 0.0, %v994
        %v996 = vpop.f32.mrb[0].mxu0
        %997 = vdwg.mxu0
        %s998 = scalar_lea.vmem %s220, 112 [#allocation6]
        %999 = vst [vmem:[%s998] sm:$0xff] %v990
        %1000 = vst [vmem:[%s998 + $0x8] sm:$0xf] %v995
        %s1001 = sand.u32 %s113, 1
        %s1002 = sand.u32 %s113, 1
        %s1003 = smul.addr %s1002, 128
        %s1004 = scalar_lea.vmem [#allocation6], %s1003
        // Predicated region
        $region41: #{tpu_custom_call.1} parent=31 // pred_check
          %p1005 = pneg %p123
        $region42: #{tpu_custom_call.1} parent=31 // pred_check_branch
          %1007 = sbr.rel (%p1005) target = $region44
        $region43: #{tpu_custom_call.1} parent=31 // pred_region
          %s1008 = smul.u32 8, %s23
          %s1009 = smul.addr %s1008, 4
          %s1010 = sadd.s32 %s22, %s1009
          %s1011 = smul.addr %s1010, 8
          %s1012 = scalar_lea.vmem %s3, %s1011
          // Predicated region
          $region45: #{tpu_custom_call.1} parent=43 // pred_check
            _
          $region46: #{tpu_custom_call.1} parent=43 // pred_check_branch
            %1014 = sbr.rel (0) target = $region48
          $region47: #{tpu_custom_call.1} parent=43 // pred_region
            // Predicated region
            $region49: #{tpu_custom_call.1} parent=47 // pred_check
              _
            $region50: #{tpu_custom_call.1} parent=47 // pred_check_branch
              %1016 = sbr.rel (0) target = $region52
            $region51: #{tpu_custom_call.1} parent=47 // pred_region
              // Predicated region
              $region64: #{tpu_custom_call.1} parent=51 // pred_check
                _
              $region65: #{tpu_custom_call.1} parent=51 // pred_check_branch
                %1061 = sbr.rel (0) target = $region67
              $region66: #{tpu_custom_call.1} parent=51 // pred_region
                loop: start=0, step=1, limit=1
                $region68: #{tpu_custom_call.1} parent=66 // loop_pre_header
                  _
                $region69: #{tpu_custom_call.1} parent=66 // loop_header
                  %s1063 = sphi 0, %s1067
                  %p1064 = scmp.ge.s32.totalorder %s1063, 1
                  %s1068 = sphi %s1004, %s1004
                  %s1069 = sphi %s1012, %s1012
                $region70: #{tpu_custom_call.1} parent=66 // loop_header_branch
                  %1066 = sbr.rel (%p1064) target = $region74
                $region71: #{tpu_custom_call.1} parent=66 // loop_body
                  %v1070 = vld [vmem:[%s1068] sm:$0xff]
                  %1071 = vst [vmem:[%s1069] sm:$0xff] %v1070
                  %v1072 = vld [vmem:[%s1068 + $0x8] sm:$0xff]
                  %1073 = vst [vmem:[%s1069 + $0x10] sm:$0xff] %v1072
                  %v1074 = vld [vmem:[%s1068 + $0x10] sm:$0xff]
                  %1075 = vst [vmem:[%s1069 + $0x20] sm:$0xff] %v1074
                  %v1076 = vld [vmem:[%s1068 + $0x18] sm:$0xff]
                  %1077 = vst [vmem:[%s1069 + $0x30] sm:$0xff] %v1076
                  %v1078 = vld [vmem:[%s1068 + $0x20] sm:$0xff]
                  %1079 = vst [vmem:[%s1069 + $0x40] sm:$0xff] %v1078
                  %v1080 = vld [vmem:[%s1068 + $0x28] sm:$0xff]
                  %1081 = vst [vmem:[%s1069 + $0x50] sm:$0xff] %v1080
                  %v1082 = vld [vmem:[%s1068 + $0x30] sm:$0xff]
                  %1083 = vst [vmem:[%s1069 + $0x60] sm:$0xff] %v1082
                  %v1084 = vld [vmem:[%s1068 + $0x38] sm:$0xff]
                  %1085 = vst [vmem:[%s1069 + $0x70] sm:$0xff] %v1084
                  %v1086 = vld [vmem:[%s1068 + $0x40] sm:$0xff]
                  %1087 = vst [vmem:[%s1069 + $0x80] sm:$0xff] %v1086
                  %v1088 = vld [vmem:[%s1068 + $0x48] sm:$0xff]
                  %1089 = vst [vmem:[%s1069 + $0x90] sm:$0xff] %v1088
                  %v1090 = vld [vmem:[%s1068 + $0x50] sm:$0xff]
                  %1091 = vst [vmem:[%s1069 + $0xa0] sm:$0xff] %v1090
                  %v1092 = vld [vmem:[%s1068 + $0x58] sm:$0xff]
                  %1093 = vst [vmem:[%s1069 + $0xb0] sm:$0xff] %v1092
                  %v1094 = vld [vmem:[%s1068 + $0x60] sm:$0xff]
                  %1095 = vst [vmem:[%s1069 + $0xc0] sm:$0xff] %v1094
                  %v1096 = vld [vmem:[%s1068 + $0x68] sm:$0xff]
                  %1097 = vst [vmem:[%s1069 + $0xd0] sm:$0xff] %v1096
                  %v1098 = vld [vmem:[%s1068 + $0x70] sm:$0xff]
                  %1099 = vst [vmem:[%s1069 + $0xe0] sm:$0xff] %v1098
                  %v1100 = vld [vmem:[%s1068 + $0x78] sm:$0xff]
                  %1101 = vst [vmem:[%s1069 + $0xf0] sm:$0xff] %v1100
                $region72: #{tpu_custom_call.1} parent=66 // loop_footer
                  %s1067 = sadd.s32 1, %s1063
                $region73: #{tpu_custom_call.1} parent=66 // loop_footer_branch
                  %1062 = sbr.rel target = $region69
                $region74: #{tpu_custom_call.1} parent=66 // loop_exit
                  _
              $region67: #{tpu_custom_call.1} parent=51 // pred_fallthru
                _
              // Predicated region
              $region75: #{tpu_custom_call.1} parent=51 // pred_check
                _
              $region76: #{tpu_custom_call.1} parent=51 // pred_check_branch
                %1103 = sbr.rel target = $region78
              $region77: #{tpu_custom_call.1} parent=51 // pred_region
                _
              $region78: #{tpu_custom_call.1} parent=51 // pred_fallthru
                _
            $region52: #{tpu_custom_call.1} parent=47 // pred_fallthru
              _
            // Predicated region
            $region53: #{tpu_custom_call.1} parent=47 // pred_check
              _
            $region54: #{tpu_custom_call.1} parent=47 // pred_check_branch
              %1018 = sbr.rel target = $region56
            $region55: #{tpu_custom_call.1} parent=47 // pred_region
              loop: start=0, step=1, limit=1
              $region57: #{tpu_custom_call.1} parent=55 // loop_pre_header
                _
              $region58: #{tpu_custom_call.1} parent=55 // loop_header
                %s1021 = sphi 0, %s1025
                %p1022 = scmp.ge.s32.totalorder %s1021, 1
                %s1026 = sphi %s1004, %s1004
                %s1027 = sphi %s1012, %s1012
              $region59: #{tpu_custom_call.1} parent=55 // loop_header_branch
                %1024 = sbr.rel (%p1022) target = $region63
              $region60: #{tpu_custom_call.1} parent=55 // loop_body
                %v1028 = vld [vmem:[%s1026] sm:$0xff]
                %1029 = vst [vmem:[%s1027] sm:$0xff] %v1028
                %v1030 = vld [vmem:[%s1026 + $0x8] sm:$0xff]
                %1031 = vst [vmem:[%s1027 + $0x10] sm:$0xff] %v1030
                %v1032 = vld [vmem:[%s1026 + $0x10] sm:$0xff]
                %1033 = vst [vmem:[%s1027 + $0x20] sm:$0xff] %v1032
                %v1034 = vld [vmem:[%s1026 + $0x18] sm:$0xff]
                %1035 = vst [vmem:[%s1027 + $0x30] sm:$0xff] %v1034
                %v1036 = vld [vmem:[%s1026 + $0x20] sm:$0xff]
                %1037 = vst [vmem:[%s1027 + $0x40] sm:$0xff] %v1036
                %v1038 = vld [vmem:[%s1026 + $0x28] sm:$0xff]
                %1039 = vst [vmem:[%s1027 + $0x50] sm:$0xff] %v1038
                %v1040 = vld [vmem:[%s1026 + $0x30] sm:$0xff]
                %1041 = vst [vmem:[%s1027 + $0x60] sm:$0xff] %v1040
                %v1042 = vld [vmem:[%s1026 + $0x38] sm:$0xff]
                %1043 = vst [vmem:[%s1027 + $0x70] sm:$0xff] %v1042
                %v1044 = vld [vmem:[%s1026 + $0x40] sm:$0xff]
                %1045 = vst [vmem:[%s1027 + $0x80] sm:$0xff] %v1044
                %v1046 = vld [vmem:[%s1026 + $0x48] sm:$0xff]
                %1047 = vst [vmem:[%s1027 + $0x90] sm:$0xff] %v1046
                %v1048 = vld [vmem:[%s1026 + $0x50] sm:$0xff]
                %1049 = vst [vmem:[%s1027 + $0xa0] sm:$0xff] %v1048
                %v1050 = vld [vmem:[%s1026 + $0x58] sm:$0xff]
                %1051 = vst [vmem:[%s1027 + $0xb0] sm:$0xff] %v1050
                %v1052 = vld [vmem:[%s1026 + $0x60] sm:$0xff]
                %1053 = vst [vmem:[%s1027 + $0xc0] sm:$0xff] %v1052
                %v1054 = vld [vmem:[%s1026 + $0x68] sm:$0xff]
                %1055 = vst [vmem:[%s1027 + $0xd0] sm:$0xff] %v1054
                %v1056 = vld [vmem:[%s1026 + $0x70] sm:$0xff]
                %1057 = vst [vmem:[%s1027 + $0xe0] sm:$0xff] %v1056
                %v1058 = vld [vmem:[%s1026 + $0x78] sm:$0xff]
                %1059 = vst [vmem:[%s1027 + $0xf0] sm:$0xff] %v1058
              $region61: #{tpu_custom_call.1} parent=55 // loop_footer
                %s1025 = sadd.s32 1, %s1021
              $region62: #{tpu_custom_call.1} parent=55 // loop_footer_branch
                %1020 = sbr.rel target = $region58
              $region63: #{tpu_custom_call.1} parent=55 // loop_exit
                _
            $region56: #{tpu_custom_call.1} parent=47 // pred_fallthru
              _
          $region48: #{tpu_custom_call.1} parent=43 // pred_fallthru
            _
          %1104 = vnop
        $region44: #{tpu_custom_call.1} parent=31 // pred_fallthru
          _
      $region32: #{tpu_custom_call.1} parent=5 // pred_fallthru
        _
      %p1105 = scmp.le.s32.totalorder 2, %s13
      // Predicated region
      $region79: #{tpu_custom_call.1} parent=5 // pred_check
        %p1106 = pneg %p1105
      $region80: #{tpu_custom_call.1} parent=5 // pred_check_branch
        %1108 = sbr.rel (%p1106) target = $region82
      $region81: #{tpu_custom_call.1} parent=5 // pred_region
        %s1109 = ssub.s32 %s13, 2
        // Predicated region
        $region83: #{tpu_custom_call.1} parent=81 // pred_check
          %p1110 = pneg %p129
        $region84: #{tpu_custom_call.1} parent=81 // pred_check_branch
          %1112 = sbr.rel (%p1110) target = $region86
        $region85: #{tpu_custom_call.1} parent=81 // pred_region
          %s1113 = sand.u32 %s114, 1
          %s1114 = sand.u32 %s114, 1
          %s1115 = smul.addr %s1114, 128
          %s1116 = scalar_lea.vmem [#allocation6], %s1115
        $region86: #{tpu_custom_call.1} parent=81 // pred_fallthru
          _
      $region82: #{tpu_custom_call.1} parent=5 // pred_fallthru
        _
    $region6: #{tpu_custom_call.1} parent=1 // loop_footer
      %s17 = sadd.s32 1, %s13
    $region7: #{tpu_custom_call.1} parent=1 // loop_footer_branch
      %12 = sbr.rel target = $region3
    $region8: #{tpu_custom_call.1} parent=1 // loop_exit
      _
    %1117 = vsyncpa [#allocation3], 1
    %s1118 = scalar_lea.sflag [#allocation3], 1
    %1119 = vsyncpa %s1118, 1
    %1120 = vsyncpa [#allocation5], 1
    %s1121 = scalar_lea.sflag [#allocation5], 1
    %1122 = vsyncpa %s1121, 1

</llo_original>
